<compile_context>
chip_gen: v7x
topology: tpu7x:2x2x1
jax: 0.10.0
libtpu: 0.0.40
codegen_flags: <defaults>
</compile_context>

<pallas_src>
import functools

import numpy as np

import jax
import jax.numpy as jnp
from jax import lax
from jax.experimental import pallas as pl
from jax.experimental.pallas import tpu as pltpu


# ----------------------------------------------------------------------------
# Capability probes (cached): pltpu.roll direction and pl.Buffered(1) support.
# ----------------------------------------------------------------------------
@functools.lru_cache(maxsize=None)
def _roll_convention():
    """+1 if pltpu.roll matches jnp.roll (out[i] = x[i - shift]), -1 if opposite,
    None if pltpu.roll is unusable (fall back to concatenate)."""
    try:
        x = jnp.arange(8 * 128, dtype=jnp.float32).reshape(8, 128)

        def k(x_ref, o_ref):
            o_ref[...] = pltpu.roll(x_ref[...], 1, axis=1)

        y = pl.pallas_call(k, out_shape=jax.ShapeDtypeStruct((8, 128), jnp.float32))(x)
        y = np.asarray(jax.device_get(y))
        xh = np.asarray(jax.device_get(x))
        if np.array_equal(y, np.roll(xh, 1, axis=1)):
            return 1
        if np.array_equal(y, np.roll(xh, -1, axis=1)):
            return -1
    except Exception:
        pass
    return None


@functools.lru_cache(maxsize=None)
def _single_buffer_mode():
    """pl.Buffered(1) if single-buffering of constant blocks is supported, else None."""
    buffered = getattr(pl, "Buffered", None)
    if buffered is None:
        return None
    try:
        mode = buffered(1)

        def k(x_ref, o_ref):
            o_ref[...] = x_ref[...] + 1.0

        x = jnp.zeros((8, 128), jnp.float32)
        y = pl.pallas_call(
            k,
            out_shape=jax.ShapeDtypeStruct((8, 128), jnp.float32),
            grid=(2,),
            in_specs=[pl.BlockSpec((8, 128), lambda i: (0, 0), pipeline_mode=mode)],
            out_specs=pl.BlockSpec((8, 128), lambda i: (0, 0)),
        )(x)
        y = np.asarray(jax.device_get(y))
        if not np.array_equal(y, np.ones((8, 128), np.float32)):
            return None
        return mode
    except Exception:
        return None


@functools.lru_cache(maxsize=None)
def _vmem_limit_bytes():
    """Generation-aware scoped-VMEM limit (v5e/v6e: 128 MiB physical, v7x: 64 MiB)."""
    try:
        cap = pltpu.get_tpu_info().vmem_capacity_bytes
        return max(32 * 1024 * 1024, int(cap) * 3 // 4)
    except Exception:
        return 48 * 1024 * 1024


def _const_spec(a):
    """BlockSpec for an input that is constant across the (batch) grid."""
    index_map = lambda b, _nd=a.ndim: (0,) * _nd
    mode = _single_buffer_mode()
    if mode is not None:
        return pl.BlockSpec(a.shape, index_map, pipeline_mode=mode)
    return pl.BlockSpec(a.shape, index_map)


# ----------------------------------------------------------------------------
# In-kernel building blocks.
# ----------------------------------------------------------------------------
def _tile_lanes(t, reps):
    return t if reps == 1 else jnp.concatenate([t] * reps, axis=1)


def _rope_full_slab(x, cos_f, sin_lo_f, sin_hi_f, *, d2, roll_conv):
    """Rotate-half RoPE over a full lane-dense (L, n_heads*D) slab.

    Cross-head wrap garbage from the two full-width rotations is zeroed by the masked,
    sign-folded sin tables.  Uses pltpu.roll (XLU) at production lane widths; falls back
    to the known-good concatenate construction otherwise.
    """
    W = x.shape[-1]
    if roll_conv is not None and W % 128 == 0:
        lo = pltpu.roll(x, (-roll_conv * d2) % W, axis=1)   # lo[:, i] = x[:, (i + d2) % W]
        hi = pltpu.roll(x, (roll_conv * d2) % W, axis=1)    # hi[:, i] = x[:, (i - d2) % W]
    else:
        lo = jnp.concatenate([x[:, d2:], x[:, :d2]], axis=1)
        hi = jnp.concatenate([x[:, W - d2:], x[:, :W - d2]], axis=1)
    return x * cos_f + lo * sin_lo_f + hi * sin_hi_f


def _attend(xq_bf, xkv_bf, wq, wk, wv, rope_q, rope_k, add_mask, acc_ref,
            *, num_heads, num_kv_heads, head_dim, roll_conv):
    """One GQA attention; per-head outputs (bf16) are written into acc_ref (Lq, H*D).

    xq_bf: (Lq, E) bf16.  xkv_bf: (Lk, E) bf16.  Weights are bf16, [in, out] layout,
    kv-head-major head ordering, 1/sqrt(D) folded into wq.  rope_*: None or a tuple of
    (cos, sin_lo, sin_hi), each (L, D) f32.  add_mask: None or (1, Lk) additive f32.
    """
    H, Hkv, D = num_heads, num_kv_heads, head_dim
    G = H // Hkv
    d2 = D // 2
    Lq = xq_bf.shape[0]

    # Projections: bf16 operands, f32 accumulation on the MXU.
    q = jnp.dot(xq_bf, wq, preferred_element_type=jnp.float32)    # (Lq, H*D)
    k = jnp.dot(xkv_bf, wk, preferred_element_type=jnp.float32)   # (Lk, Hkv*D)
    v = jnp.dot(xkv_bf, wv, preferred_element_type=jnp.float32)   # (Lk, Hkv*D)

    # RoPE on full slabs (f32 elementwise); small (L, D) tables tiled once here.
    if rope_q is not None:
        tabs = [_tile_lanes(t, H) for t in rope_q]
        q = _rope_full_slab(q, *tabs, d2=d2, roll_conv=roll_conv)
    if rope_k is not None:
        tabs = [_tile_lanes(t, Hkv) for t in rope_k]
        k = _rope_full_slab(k, *tabs, d2=d2, roll_conv=roll_conv)

    # Single slab casts (hoisted out of the per-kv-head loop).
    q = q.astype(jnp.bfloat16)
    k = k.astype(jnp.bfloat16)
    v = v.astype(jnp.bfloat16)

    # Stack the G query heads along rows only while the result still fits one MXU pass
    # (256 rows on v6e/v7x; two passes on v5e).  For long Lq run per-head matmuls.
    stack = (G > 1) and (G * Lq <= 256)

    for j in range(Hkv):
        kj = k[:, j * D:(j + 1) * D]                     # (Lk, D)
        vj = v[:, j * D:(j + 1) * D]                     # (Lk, D)
        # kv-head-major ordering => the G query heads of kv head j are one contiguous band.
        band = q[:, j * G * D:(j + 1) * G * D]           # (Lq, G*D)

        def sdpa(qm):
            # qm: (M, D) bf16 -> (M, D) f32, softmax over Lk (scale folded into wq).
            s = lax.dot_general(qm, kj, (((1,), (1,)), ((), ())),
                                preferred_element_type=jnp.float32)        # (M, Lk)
            if add_mask is not None:
                # finfo.min additive mask matches the torch module; a fully-masked row is
                # undefined there as well.
                s = s + add_mask
            s = s - jnp.max(s, axis=-1, keepdims=True)
            p = jnp.exp(s)
            l = jnp.sum(p, axis=-1, keepdims=True)
            o = jnp.dot(p.astype(jnp.bfloat16), vj,
                        preferred_element_type=jnp.float32)                # (M, D)
            # Deferred softmax normalization on the small (M, D) output (EUP reciprocal).
            return o * pl.reciprocal(l, approx=True)

        if stack:
            qj = jnp.concatenate([band[:, g * D:(g + 1) * D] for g in range(G)], axis=0)
            o = sdpa(qj)                                                    # (G*Lq, D)
            for g in range(G):
                acc_ref[:, (j * G + g) * D:(j * G + g + 1) * D] = (
                    o[g * Lq:(g + 1) * Lq, :].astype(acc_ref.dtype))
        else:
            for g in range(G):
                o = sdpa(band[:, g * D:(g + 1) * D])                        # (Lq, D)
                acc_ref[:, (j * G + g) * D:(j * G + g + 1) * D] = o.astype(acc_ref.dtype)
    # NOTE: acc_ref is fully overwritten for every head band every grid step, so it does
    # not need zero-initialization.


# ----------------------------------------------------------------------------
# Fused MLA kernel: latents_to_input attention + input_to_latents attention.
# ----------------------------------------------------------------------------
def _mla_fused_kernel(*refs, num_heads, num_kv_heads, head_dim, has_mask, roll_conv):
    (lat_ref, xkv_ref, xq_ref,
     wq1, wk1, wv1, wo1,
     wq2, wk2, wv2, wo2,
     ck, slk, shk,          # RoPE-K tables for attention 1: (Lk, D) each
     cq, slq, shq) = refs[:17]
    idx = 17
    mask_ref = None
    if has_mask:
        mask_ref = refs[idx]
        idx += 1
    out_ref, agg_ref = refs[idx], refs[idx + 1]
    agg_acc, out_acc = refs[idx + 2], refs[idx + 3]

    add_mask = mask_ref[0] if has_mask else None            # (1, Lk) additive f32

    # ---- latents_to_input_attn: queries = latent parameter, RoPE on K, masked. ----
    _attend(lat_ref[0], xkv_ref[0], wq1[...], wk1[...], wv1[...],
            rope_q=None, rope_k=(ck[...], slk[...], shk[...]),
            add_mask=add_mask, acc_ref=agg_acc,
            num_heads=num_heads, num_kv_heads=num_kv_heads, head_dim=head_dim,
            roll_conv=roll_conv)
    agg_f32 = jnp.dot(agg_acc[...], wo1[...], preferred_element_type=jnp.float32)
    agg_ref[0] = agg_f32.astype(agg_ref.dtype)               # cache output (tiny)
    agg_bf = agg_f32.astype(jnp.bfloat16)                    # stays VMEM-resident

    # ---- input_to_latents_attn: queries = x_q (RoPE on Q), kv = aggregated latents. ----
    _attend(xq_ref[0], agg_bf, wq2[...], wk2[...], wv2[...],
            rope_q=(cq[...], slq[...], shq[...]), rope_k=None,
            add_mask=None, acc_ref=out_acc,
            num_heads=num_heads, num_kv_heads=num_kv_heads, head_dim=head_dim,
            roll_conv=roll_conv)
    out = jnp.dot(out_acc[...], wo2[...], preferred_element_type=jnp.float32)
    out_ref[0] = out.astype(out_ref.dtype)
    # TODO(synk): at the toy E (<128) the output last dim is not lane-dense (masked stores);
    # moot at production E >= 128.


def mla_fused(prepped, x_q, x_kv, rope_q_tabs, rope_k_tabs, add_mask,
              *, num_heads, num_kv_heads):
    B, Lq, E = x_q.shape
    _, Lk, _ = x_kv.shape
    Ln = prepped["latent_queries"].shape[1]
    D = E // num_heads
    has_mask = add_mask is not None

    # bf16 activation streams (half the HBM->VMEM DMA bytes).
    xq_bf = x_q.astype(jnp.bfloat16)
    xkv_bf = x_kv.astype(jnp.bfloat16)

    kernel = functools.partial(
        _mla_fused_kernel, num_heads=num_heads, num_kv_heads=num_kv_heads,
        head_dim=D, has_mask=has_mask, roll_conv=_roll_convention())

    w1, w2 = prepped["l2i"], prepped["i2l"]
    inputs = [prepped["latent_queries"], xkv_bf, xq_bf,
              w1["wq"], w1["wk"], w1["wv"], w1["wo"],
              w2["wq"], w2["wk"], w2["wv"], w2["wo"],
              *rope_k_tabs, *rope_q_tabs]
    in_specs = [
        _const_spec(prepped["latent_queries"]),
        pl.BlockSpec((1, Lk, E), lambda b: (b, 0, 0)),
        pl.BlockSpec((1, Lq, E), lambda b: (b, 0, 0)),
    ]
    in_specs += [_const_spec(a) for a in inputs[3:]]
    if has_mask:
        inputs.append(add_mask)
        in_specs.append(pl.BlockSpec((1, 1, Lk), lambda b: (b, 0, 0)))

    out_shape = (jax.ShapeDtypeStruct((B, Lq, E), x_q.dtype),
                 jax.ShapeDtypeStruct((B, Ln, E), x_q.dtype))
    out_specs = (pl.BlockSpec((1, Lq, E), lambda b: (b, 0, 0)),
                 pl.BlockSpec((1, Ln, E), lambda b: (b, 0, 0)))

    return pl.pallas_call(
        kernel,
        out_shape=out_shape,
        grid=(B,),
        in_specs=in_specs,
        out_specs=out_specs,
        scratch_shapes=[pltpu.VMEM((Ln, num_heads * D), jnp.bfloat16),
                        pltpu.VMEM((Lq, num_heads * D), jnp.bfloat16)],
        compiler_params=pltpu.CompilerParams(
            dimension_semantics=("parallel",),          # batch across TensorCores (v7x)
            vmem_limit_bytes=_vmem_limit_bytes()),
    )(*inputs)


# ----------------------------------------------------------------------------
# Single-attention kernel (used for the past_latent_kv / cached path).
# ----------------------------------------------------------------------------
def _gqa_kernel(*refs, num_heads, num_kv_heads, head_dim,
                apply_rope_q, apply_rope_k, has_mask, roll_conv):
    refs = list(refs)
    xq_ref, xkv_ref, wq, wk, wv, wo = refs[:6]
    idx = 6
    rope_q = rope_k = None
    if apply_rope_q:
        rope_q = tuple(r[...] for r in refs[idx:idx + 3]); idx += 3
    if apply_rope_k:
        rope_k = tuple(r[...] for r in refs[idx:idx + 3]); idx += 3
    add_mask = None
    if has_mask:
        add_mask = refs[idx][0]; idx += 1
    o_ref, acc_ref = refs[idx], refs[idx + 1]

    _attend(xq_ref[0], xkv_ref[0], wq[...], wk[...], wv[...],
            rope_q=rope_q, rope_k=rope_k, add_mask=add_mask, acc_ref=acc_ref,
            num_heads=num_heads, num_kv_heads=num_kv_heads, head_dim=head_dim,
            roll_conv=roll_conv)
    out = jnp.dot(acc_ref[...], wo[...], preferred_element_type=jnp.float32)
    o_ref[0] = out.astype(o_ref.dtype)


def gqa_attention(w, x_q, x_kv, rope_q, rope_k, add_mask, *, num_heads, num_kv_heads):
    B, Lq, E = x_q.shape
    _, Lk, _ = x_kv.shape
    D = E // num_heads
    has_mask = add_mask is not None

    xq_bf = x_q.astype(jnp.bfloat16)
    xkv_bf = x_kv.astype(jnp.bfloat16)

    kernel = functools.partial(
        _gqa_kernel, num_heads=num_heads, num_kv_heads=num_kv_heads, head_dim=D,
        apply_rope_q=rope_q is not None, apply_rope_k=rope_k is not None,
        has_mask=has_mask, roll_conv=_roll_convention())

    inputs = [xq_bf, xkv_bf, w["wq"], w["wk"], w["wv"], w["wo"]]
    in_specs = [pl.BlockSpec((1, Lq, E), lambda b: (b, 0, 0)),
                pl.BlockSpec((1, Lk, E), lambda b: (b, 0, 0))]
    in_specs += [_const_spec(a) for a in inputs[2:]]
    if rope_q is not None:
        inputs += list(rope_q)
        in_specs += [_const_spec(t) for t in rope_q]
    if rope_k is not None:
        inputs += list(rope_k)
        in_specs += [_const_spec(t) for t in rope_k]
    if has_mask:
        inputs.append(add_mask)
        in_specs.append(pl.BlockSpec((1, 1, Lk), lambda b: (b, 0, 0)))

    return pl.pallas_call(
        kernel,
        out_shape=jax.ShapeDtypeStruct((B, Lq, E), x_q.dtype),
        grid=(B,),
        in_specs=in_specs,
        out_specs=pl.BlockSpec((1, Lq, E), lambda b: (b, 0, 0)),
        scratch_shapes=[pltpu.VMEM((Lq, num_heads * D), jnp.bfloat16)],
        compiler_params=pltpu.CompilerParams(
            dimension_semantics=("parallel",),
            vmem_limit_bytes=_vmem_limit_bytes()),
    )(*inputs)


# ----------------------------------------------------------------------------
# Parameter / table preparation (done once) and the MLA forward.
# ----------------------------------------------------------------------------
def rope_cos_sin(seq_len, dim, base=10000.0):
    inv = 1.0 / (base ** (jnp.arange(0, dim, 2, dtype=jnp.float32) / dim))
    t = jnp.arange(seq_len, dtype=jnp.float32)
    freqs = jnp.outer(t, inv)                        # (L, dim/2)
    emb = jnp.concatenate([freqs, freqs], axis=-1)   # (L, dim)
    return jnp.cos(emb), jnp.sin(emb)


def rope_tables(seq_len, head_dim, base=10000.0):
    """(L, D) cos and masked/sign-folded sin tables for the full-slab rotate-half RoPE.

    The per-position pattern is identical for every head, so the tables are invariant
    under the kv-head-major head permutation applied to the weights.
    """
    D = head_dim
    d2 = D // 2
    cos, sin = rope_cos_sin(seq_len, D, base)
    lo_mask = (jnp.arange(D) < d2).astype(jnp.float32)[None, :]
    sin_lo = -sin * lo_mask          # multiplies x[:, j + d2]
    sin_hi = sin * (1.0 - lo_mask)   # multiplies x[:, j - d2]
    return cos, sin_lo, sin_hi


def init_params(key, embed_dim, num_heads, num_kv_heads, num_latents):
    D = embed_dim // num_heads
    keys = jax.random.split(key, 9)

    def lin(k, din, dout):
        # [in, out] layout (already transposed vs. PyTorch nn.Linear).
        return jax.random.normal(k, (din, dout), jnp.float32) * 0.1

    def attn_params(ks):
        return {
            "wq": lin(ks[0], embed_dim, num_heads * D),
            "wk": lin(ks[1], embed_dim, num_kv_heads * D),
            "wv": lin(ks[2], embed_dim, num_kv_heads * D),
            "wo": lin(ks[3], num_heads * D, embed_dim),
        }

    return {
        "latent_queries": jax.random.normal(
            keys[0], (1, num_latents, embed_dim), jnp.float32) * 0.02,
        "l2i": attn_params(keys[1:5]),   # latents_to_input_attn (RoPE on K)
        "i2l": attn_params(keys[5:9]),   # input_to_latents_attn (RoPE on Q)
    }


def _prep_attn_weights(w, num_heads, num_kv_heads, head_dim):
    """bf16 weights, 1/sqrt(D) folded into wq, kv-head-major query-head permutation."""
    H, Hkv, D = num_heads, num_kv_heads, head_dim
    G = H // Hkv
    E = w["wq"].shape[0]
    # New head position p = j*G + g holds original query head h = g*Hkv + j (which attends
    # kv head h % Hkv = j), so each kv head's G query heads form one contiguous column band.
    perm = jnp.array([g * Hkv + j for j in range(Hkv) for g in range(G)], dtype=jnp.int32)
    scale = 1.0 / (D ** 0.5)
    wq = (w["wq"] * scale).reshape(E, H, D)[:, perm, :].reshape(E, H * D)
    wo = w["wo"].reshape(H, D, E)[perm, :, :].reshape(H * D, E)
    return {
        "wq": wq.astype(jnp.bfloat16),
        "wk": w["wk"].astype(jnp.bfloat16),
        "wv": w["wv"].astype(jnp.bfloat16),
        "wo": wo.astype(jnp.bfloat16),
    }


def prepare_mla_params(params, num_heads, num_kv_heads):
    """Done once (not per forward): bf16 + scale folding + head permutation."""
    E = params["latent_queries"].shape[-1]
    D = E // num_heads
    return {
        "latent_queries": params["latent_queries"].astype(jnp.bfloat16),
        "l2i": _prep_attn_weights(params["l2i"], num_heads, num_kv_heads, D),
        "i2l": _prep_attn_weights(params["i2l"], num_heads, num_kv_heads, D),
    }


def _prepare_mask(attention_mask, bsz, kv_len):
    if attention_mask is None:
        return None
    if attention_mask.dtype == jnp.bool_:
        # Module semantics: True == masked out.
        add = jnp.where(attention_mask, jnp.finfo(jnp.float32).min, 0.0)
    else:
        add = (1.0 - attention_mask.astype(jnp.float32)) * jnp.finfo(jnp.float32).min
    return add.reshape(bsz, 1, kv_len)


def mla_forward(prepped, x_query_sequence, x_kv_context, rope_q_tabs, rope_k_tabs,
                attention_mask=None, *, num_heads, num_kv_heads,
                past_latent_kv=None, use_cache=False):
    """MultiHeadLatentAttention.forward.  Dropout rate 0.0 (eval) -> no-op."""
    bsz, _, _ = x_query_sequence.shape
    _, kv_len, _ = x_kv_context.shape

    if past_latent_kv is not None:
        aggregated_latents, _ = past_latent_kv
        current_cache = past_latent_kv if use_cache else None
        output = gqa_attention(prepped["i2l"], x_query_sequence, aggregated_latents,
                               rope_q=rope_q_tabs, rope_k=None, add_mask=None,
                               num_heads=num_heads, num_kv_heads=num_kv_heads)
        return output, current_cache

    add_mask = _prepare_mask(attention_mask, bsz, kv_len)
    output, aggregated_latents = mla_fused(
        prepped, x_query_sequence, x_kv_context, rope_q_tabs, rope_k_tabs, add_mask,
        num_heads=num_heads, num_kv_heads=num_kv_heads)
    current_cache = (aggregated_latents, aggregated_latents) if use_cache else None
    return output, current_cache


# ----------------------------------------------------------------------------
# Plain-JAX f32 reference (same math, no Pallas) used as a correctness check.
# ----------------------------------------------------------------------------
def _gqa_attention_ref(x_q, x_kv, wq, wk, wv, wo,
                       cos_q, sin_q, cos_k, sin_k, add_mask,
                       num_heads, num_kv_heads):
    bsz, Lq, E = x_q.shape
    _, Lk, _ = x_kv.shape
    H, Hkv = num_heads, num_kv_heads
    D = E // H
    G = H // Hkv

    q = (x_q @ wq).reshape(bsz, Lq, H, D)
    k = (x_kv @ wk).reshape(bsz, Lk, Hkv, D)
    v = (x_kv @ wv).reshape(bsz, Lk, Hkv, D)

    def rope(x, cos, sin):
        d2 = D // 2
        rot = jnp.concatenate([-x[..., d2:], x[..., :d2]], axis=-1)
        return x * cos[None, :, None, :] + rot * sin[None, :, None, :]

    if cos_q is not None:
        q = rope(q, cos_q, sin_q)
    if cos_k is not None:
        k = rope(k, cos_k, sin_k)
    if G > 1:
        k = jnp.tile(k, (1, 1, G, 1))   # matches torch unsqueeze(2).expand().reshape()
        v = jnp.tile(v, (1, 1, G, 1))

    q = q.transpose(0, 2, 1, 3)
    k = k.transpose(0, 2, 1, 3)
    v = v.transpose(0, 2, 1, 3)
    s = jnp.einsum("bhqd,bhkd->bhqk", q, k) / (D ** 0.5)
    if add_mask is not None:
        s = s + add_mask[:, None, :, :]
    p = jax.nn.softmax(s, axis=-1)
    o = jnp.einsum("bhqk,bhkd->bhqd", p, v)
    o = o.transpose(0, 2, 1, 3).reshape(bsz, Lq, H * D)
    return o @ wo


def mla_forward_ref(params, x_q, x_kv, attention_mask, *, num_heads, num_kv_heads):
    bsz, q_len, E = x_q.shape
    _, kv_len, _ = x_kv.shape
    D = E // num_heads
    num_latents = params["latent_queries"].shape[1]

    latents = jnp.broadcast_to(params["latent_queries"], (bsz, num_latents, E))
    cos_k, sin_k = rope_cos_sin(kv_len, D)
    add_mask = ((1.0 - attention_mask.astype(jnp.float32))
                * jnp.finfo(jnp.float32).min).reshape(bsz, 1, kv_len)
    w = params["l2i"]
    agg = _gqa_attention_ref(latents, x_kv, w["wq"], w["wk"], w["wv"], w["wo"],
                             None, None, cos_k, sin_k, add_mask,
                             num_heads, num_kv_heads)
    cos_q, sin_q = rope_cos_sin(q_len, D)
    w = params["i2l"]
    out = _gqa_attention_ref(x_q, agg, w["wq"], w["wk"], w["wv"], w["wo"],
                             cos_q, sin_q, None, None, None,
                             num_heads, num_kv_heads)
    return out, agg


# ----------------------------------------------------------------------------
if __name__ == "__main__":
    embed_dim = 32
    num_heads = 4
    num_kv_heads = 2
    num_latents = 8
    batch = 2
    q_len = 8        # length of x_query_sequence
    kv_len = 16      # length of x_kv_context
    head_dim = embed_dim // num_heads

    key = jax.random.PRNGKey(0)
    k_params, k_xq, k_xkv = jax.random.split(key, 3)

    params = init_params(k_params, embed_dim, num_heads, num_kv_heads, num_latents)
    prepped = prepare_mla_params(params, num_heads, num_kv_heads)

    x_query_sequence = jax.random.normal(k_xq, (batch, q_len, embed_dim), jnp.float32)
    x_kv_context = jax.random.normal(k_xkv, (batch, kv_len, embed_dim), jnp.float32)

    # 2-D attention mask over the kv context: 1 = attend, 0 = masked.
    attention_mask = jnp.ones((batch, kv_len), jnp.float32)
    attention_mask = attention_mask.at[:, kv_len - 3:].set(0.0)

    # RoPE (freqs_cis) tables computed once by the caller, (L, D) each.
    rope_q_tabs = rope_tables(q_len, head_dim)
    rope_k_tabs = rope_tables(kv_len, head_dim)

    output, cache = mla_forward(
        prepped, x_query_sequence, x_kv_context, rope_q_tabs, rope_k_tabs,
        attention_mask, num_heads=num_heads, num_kv_heads=num_kv_heads, use_cache=True)
    output = jax.block_until_ready(output)

    ref_out, ref_agg = mla_forward_ref(
        params, x_query_sequence, x_kv_context, attention_mask,
        num_heads=num_heads, num_kv_heads=num_kv_heads)
    ref_out = jax.block_until_ready(ref_out)

    assert output.shape == (batch, q_len, embed_dim)
    assert cache is not None and cache[0].shape == (batch, num_latents, embed_dim)

    # bf16 MXU operands + approx reciprocal => loosened tolerance vs. the f32 reference.
    err_out = float(jnp.max(jnp.abs(output - ref_out)))
    err_agg = float(jnp.max(jnp.abs(cache[0] - ref_agg)))
    assert jnp.allclose(cache[0], ref_agg, atol=2e-2, rtol=1e-1), err_agg
    assert jnp.allclose(output, ref_out, atol=2e-2, rtol=1e-1), err_out

    print("KERNEL_OK")
</pallas_src>

<mosaic_0001>
module attributes {stable_mosaic.version = 11 : i64} {
  func.func @k(%arg0: memref<8x128xf32, #tpu.memory_space<vmem>>, %arg1: memref<8x128xf32, #tpu.memory_space<vmem>>) attributes {dimension_semantics = [], scalar_prefetch = 0 : i64, scratch_operands = 0 : i64, tpu.core_type = #tpu.core_type<tc>} {
    %c0 = arith.constant 0 : index
    %c0_0 = arith.constant 0 : index
    %0 = vector.load %arg0[%c0, %c0_0] : memref<8x128xf32, #tpu.memory_space<vmem>>, vector<8x128xf32>
    %c1_i32 = arith.constant 1 : i32
    %1 = tpu.dynamic_rotate %0 by %c1_i32 dim 1 : vector<8x128xf32>, i32 -> vector<8x128xf32>
    %c0_1 = arith.constant 0 : index
    %c0_2 = arith.constant 0 : index
    %2 = vector.load %arg1[%c0_1, %c0_2] : memref<8x128xf32, #tpu.memory_space<vmem>>, vector<8x128xf32>
    tpu.vector_store %arg1[%c0_1, %c0_2], %1 {strides = array<i32>} : memref<8x128xf32, #tpu.memory_space<vmem>>, vector<8x128xf32>,
    return
  }
}

module attributes {stable_mosaic.version = 11 : i64} {
  func.func @k(%arg0: i32, %arg1: memref<8x128xf32, #tpu.memory_space<vmem>>, %arg2: memref<8x128xf32, #tpu.memory_space<vmem>>) attributes {dimension_semantics = [#tpu.dimension_semantics<arbitrary>], iteration_bounds = array<i64: 2>, scalar_prefetch = 0 : i64, scratch_operands = 0 : i64, tpu.core_type = #tpu.core_type<tc>, window_params = [{pipeline_mode = #tpu.pipeline_mode<synchronous>, transform_indices = @transform_0, window_bounds = array<i64: 8, 128>}, {pipeline_mode = #tpu.pipeline_mode<synchronous>, transform_indices = @transform_1, window_bounds = array<i64: 8, 128>}]} {
    %c0 = arith.constant 0 : index
    %c0_0 = arith.constant 0 : index
    %0 = vector.load %arg1[%c0, %c0_0] : memref<8x128xf32, #tpu.memory_space<vmem>>, vector<8x128xf32>
    %cst = arith.constant 1.000000e+00 : f32
    %1 = vector.broadcast %cst : f32 to vector<8x128xf32>
    %2 = arith.addf %0, %1 : vector<8x128xf32>
    %c0_1 = arith.constant 0 : index
    %c0_2 = arith.constant 0 : index
    %3 = vector.load %arg2[%c0_1, %c0_2] : memref<8x128xf32, #tpu.memory_space<vmem>>, vector<8x128xf32>
    tpu.vector_store %arg2[%c0_1, %c0_2], %2 {strides = array<i32>} : memref<8x128xf32, #tpu.memory_space<vmem>>, vector<8x128xf32>,
    return
  }
  func.func @transform_0(%arg0: i32) -> (i32, i32) {
    %c0_i32 = arith.constant 0 : i32
    %c0_i32_0 = arith.constant 0 : i32
    %c0_i32_1 = arith.constant 0 : i32
    return %c0_i32, %c0_i32_0 : i32, i32
  }
  func.func @transform_1(%arg0: i32) -> (i32, i32) {
    %c0_i32 = arith.constant 0 : i32
    %c0_i32_0 = arith.constant 0 : i32
    %c0_i32_1 = arith.constant 0 : i32
    return %c0_i32, %c0_i32_0 : i32, i32
  }
}

module attributes {stable_mosaic.version = 11 : i64} {
  func.func @_mla_fused_kernel(%arg0: i32, %arg1: memref<1x8x32xbf16, #tpu.memory_space<vmem>>, %arg2: memref<1x16x32xbf16, #tpu.memory_space<vmem>>, %arg3: memref<1x8x32xbf16, #tpu.memory_space<vmem>>, %arg4: memref<32x32xbf16, #tpu.memory_space<vmem>>, %arg5: memref<32x16xbf16, #tpu.memory_space<vmem>>, %arg6: memref<32x16xbf16, #tpu.memory_space<vmem>>, %arg7: memref<32x32xbf16, #tpu.memory_space<vmem>>, %arg8: memref<32x32xbf16, #tpu.memory_space<vmem>>, %arg9: memref<32x16xbf16, #tpu.memory_space<vmem>>, %arg10: memref<32x16xbf16, #tpu.memory_space<vmem>>, %arg11: memref<32x32xbf16, #tpu.memory_space<vmem>>, %arg12: memref<16x8xf32, #tpu.memory_space<vmem>>, %arg13: memref<16x8xf32, #tpu.memory_space<vmem>>, %arg14: memref<16x8xf32, #tpu.memory_space<vmem>>, %arg15: memref<8x8xf32, #tpu.memory_space<vmem>>, %arg16: memref<8x8xf32, #tpu.memory_space<vmem>>, %arg17: memref<8x8xf32, #tpu.memory_space<vmem>>, %arg18: memref<1x1x16xf32, #tpu.memory_space<vmem>>, %arg19: memref<1x8x32xf32, #tpu.memory_space<vmem>>, %arg20: memref<1x8x32xf32, #tpu.memory_space<vmem>>, %arg21: memref<8x32xbf16, #tpu.memory_space<vmem>>, %arg22: memref<8x32xbf16, #tpu.memory_space<vmem>>) attributes {dimension_semantics = [#tpu.dimension_semantics<parallel>], iteration_bounds = array<i64: 2>, scalar_prefetch = 0 : i64, scratch_operands = 2 : i64, tpu.core_type = #tpu.core_type<tc>, window_params = [{pipeline_mode = #tpu.pipeline_mode<synchronous>, transform_indices = @transform_0, window_bounds = array<i64: 1, 8, 32>}, {transform_indices = @transform_1, window_bounds = array<i64: 1, 16, 32>}, {transform_indices = @transform_2, window_bounds = array<i64: 1, 8, 32>}, {pipeline_mode = #tpu.pipeline_mode<synchronous>, transform_indices = @transform_3, window_bounds = array<i64: 32, 32>}, {pipeline_mode = #tpu.pipeline_mode<synchronous>, transform_indices = @transform_4, window_bounds = array<i64: 32, 16>}, {pipeline_mode = #tpu.pipeline_mode<synchronous>, transform_indices = @transform_5, window_bounds = array<i64: 32, 16>}, {pipeline_mode = #tpu.pipeline_mode<synchronous>, transform_indices = @transform_6, window_bounds = array<i64: 32, 32>}, {pipeline_mode = #tpu.pipeline_mode<synchronous>, transform_indices = @transform_7, window_bounds = array<i64: 32, 32>}, {pipeline_mode = #tpu.pipeline_mode<synchronous>, transform_indices = @transform_8, window_bounds = array<i64: 32, 16>}, {pipeline_mode = #tpu.pipeline_mode<synchronous>, transform_indices = @transform_9, window_bounds = array<i64: 32, 16>}, {pipeline_mode = #tpu.pipeline_mode<synchronous>, transform_indices = @transform_10, window_bounds = array<i64: 32, 32>}, {pipeline_mode = #tpu.pipeline_mode<synchronous>, transform_indices = @transform_11, window_bounds = array<i64: 16, 8>}, {pipeline_mode = #tpu.pipeline_mode<synchronous>, transform_indices = @transform_12, window_bounds = array<i64: 16, 8>}, {pipeline_mode = #tpu.pipeline_mode<synchronous>, transform_indices = @transform_13, window_bounds = array<i64: 16, 8>}, {pipeline_mode = #tpu.pipeline_mode<synchronous>, transform_indices = @transform_14, window_bounds = array<i64: 8, 8>}, {pipeline_mode = #tpu.pipeline_mode<synchronous>, transform_indices = @transform_15, window_bounds = array<i64: 8, 8>}, {pipeline_mode = #tpu.pipeline_mode<synchronous>, transform_indices = @transform_16, window_bounds = array<i64: 8, 8>}, {transform_indices = @transform_17, window_bounds = array<i64: 1, 1, 16>}, {transform_indices = @transform_18, window_bounds = array<i64: 1, 8, 32>}, {transform_indices = @transform_19, window_bounds = array<i64: 1, 8, 32>}]} {
    %c0 = arith.constant 0 : index
    %c0_0 = arith.constant 0 : index
    %c0_1 = arith.constant 0 : index
    %0 = vector.load %arg18[%c0, %c0_0, %c0_1] : memref<1x1x16xf32, #tpu.memory_space<vmem>>, vector<1x1x16xf32>
    %1 = vector.shape_cast %0 : vector<1x1x16xf32> to vector<1x16xf32>
    %c0_2 = arith.constant 0 : index
    %c0_3 = arith.constant 0 : index
    %c0_4 = arith.constant 0 : index
    %2 = vector.load %arg1[%c0_2, %c0_3, %c0_4] : memref<1x8x32xbf16, #tpu.memory_space<vmem>>, vector<1x8x32xbf16>
    %3 = vector.shape_cast %2 : vector<1x8x32xbf16> to vector<8x32xbf16>
    %c0_5 = arith.constant 0 : index
    %c0_6 = arith.constant 0 : index
    %c0_7 = arith.constant 0 : index
    %4 = vector.load %arg2[%c0_5, %c0_6, %c0_7] : memref<1x16x32xbf16, #tpu.memory_space<vmem>>, vector<1x16x32xbf16>
    %5 = vector.shape_cast %4 : vector<1x16x32xbf16> to vector<16x32xbf16>
    %c0_8 = arith.constant 0 : index
    %c0_9 = arith.constant 0 : index
    %6 = vector.load %arg4[%c0_8, %c0_9] : memref<32x32xbf16, #tpu.memory_space<vmem>>, vector<32x32xbf16>
    %c0_10 = arith.constant 0 : index
    %c0_11 = arith.constant 0 : index
    %7 = vector.load %arg5[%c0_10, %c0_11] : memref<32x16xbf16, #tpu.memory_space<vmem>>, vector<32x16xbf16>
    %c0_12 = arith.constant 0 : index
    %c0_13 = arith.constant 0 : index
    %8 = vector.load %arg6[%c0_12, %c0_13] : memref<32x16xbf16, #tpu.memory_space<vmem>>, vector<32x16xbf16>
    %c0_14 = arith.constant 0 : index
    %c0_15 = arith.constant 0 : index
    %9 = vector.load %arg12[%c0_14, %c0_15] : memref<16x8xf32, #tpu.memory_space<vmem>>, vector<16x8xf32>
    %c0_16 = arith.constant 0 : index
    %c0_17 = arith.constant 0 : index
    %10 = vector.load %arg13[%c0_16, %c0_17] : memref<16x8xf32, #tpu.memory_space<vmem>>, vector<16x8xf32>
    %c0_18 = arith.constant 0 : index
    %c0_19 = arith.constant 0 : index
    %11 = vector.load %arg14[%c0_18, %c0_19] : memref<16x8xf32, #tpu.memory_space<vmem>>, vector<16x8xf32>
    %cst = arith.constant dense<0.000000e+00> : vector<8x32xf32>
    %12 = tpu.matmul %3, %6, %cst {dimension_numbers = #tpu.dot_dimension_numbers<[1], [0], [0], [1], [0, 0, 1, 1], [], []>} : vector<8x32xbf16>, vector<32x32xbf16>, vector<8x32xf32> -> vector<8x32xf32>
    %cst_20 = arith.constant dense<0.000000e+00> : vector<16x16xf32>
    %13 = tpu.matmul %5, %7, %cst_20 {dimension_numbers = #tpu.dot_dimension_numbers<[1], [0], [0], [1], [0, 0, 1, 1], [], []>} : vector<16x32xbf16>, vector<32x16xbf16>, vector<16x16xf32> -> vector<16x16xf32>
    %cst_21 = arith.constant dense<0.000000e+00> : vector<16x16xf32>
    %14 = tpu.matmul %5, %8, %cst_21 {dimension_numbers = #tpu.dot_dimension_numbers<[1], [0], [0], [1], [0, 0, 1, 1], [], []>} : vector<16x32xbf16>, vector<32x16xbf16>, vector<16x16xf32> -> vector<16x16xf32>
    %15 = tpu.concatenate %9, %9 in 1 : vector<16x8xf32>, vector<16x8xf32> -> vector<16x16xf32>
    %16 = tpu.concatenate %10, %10 in 1 : vector<16x8xf32>, vector<16x8xf32> -> vector<16x16xf32>
    %17 = tpu.concatenate %11, %11 in 1 : vector<16x8xf32>, vector<16x8xf32> -> vector<16x16xf32>
    %18 = vector.extract_strided_slice %13 {offsets = [0, 4], sizes = [16, 12], strides = [1, 1]} : vector<16x16xf32> to vector<16x12xf32>
    %19 = vector.extract_strided_slice %13 {offsets = [0, 0], sizes = [16, 4], strides = [1, 1]} : vector<16x16xf32> to vector<16x4xf32>
    %20 = tpu.concatenate %18, %19 in 1 : vector<16x12xf32>, vector<16x4xf32> -> vector<16x16xf32>
    %21 = vector.extract_strided_slice %13 {offsets = [0, 12], sizes = [16, 4], strides = [1, 1]} : vector<16x16xf32> to vector<16x4xf32>
    %22 = vector.extract_strided_slice %13 {offsets = [0, 0], sizes = [16, 12], strides = [1, 1]} : vector<16x16xf32> to vector<16x12xf32>
    %23 = tpu.concatenate %21, %22 in 1 : vector<16x4xf32>, vector<16x12xf32> -> vector<16x16xf32>
    %24 = arith.mulf %13, %15 : vector<16x16xf32>
    %25 = arith.mulf %20, %16 : vector<16x16xf32>
    %26 = arith.addf %24, %25 : vector<16x16xf32>
    %27 = arith.mulf %23, %17 : vector<16x16xf32>
    %28 = arith.addf %26, %27 : vector<16x16xf32>
    %29 = arith.truncf %12 : vector<8x32xf32> to vector<8x32xbf16>
    %30 = arith.truncf %28 : vector<16x16xf32> to vector<16x16xbf16>
    %31 = arith.truncf %14 : vector<16x16xf32> to vector<16x16xbf16>
    %32 = vector.extract_strided_slice %30 {offsets = [0, 0], sizes = [16, 8], strides = [1, 1]} : vector<16x16xbf16> to vector<16x8xbf16>
    %33 = vector.extract_strided_slice %31 {offsets = [0, 0], sizes = [16, 8], strides = [1, 1]} : vector<16x16xbf16> to vector<16x8xbf16>
    %34 = vector.extract_strided_slice %29 {offsets = [0, 0], sizes = [8, 16], strides = [1, 1]} : vector<8x32xbf16> to vector<8x16xbf16>
    %35 = vector.extract_strided_slice %34 {offsets = [0, 0], sizes = [8, 8], strides = [1, 1]} : vector<8x16xbf16> to vector<8x8xbf16>
    %36 = vector.extract_strided_slice %34 {offsets = [0, 8], sizes = [8, 8], strides = [1, 1]} : vector<8x16xbf16> to vector<8x8xbf16>
    %37 = tpu.concatenate %35, %36 in 0 : vector<8x8xbf16>, vector<8x8xbf16> -> vector<16x8xbf16>
    %cst_22 = arith.constant dense<0.000000e+00> : vector<16x16xf32>
    %38 = tpu.matmul %37, %32, %cst_22 {dimension_numbers = #tpu.dot_dimension_numbers<[1], [1], [0], [0], [0, 0, 1, 0], [], []>} : vector<16x8xbf16>, vector<16x8xbf16>, vector<16x16xf32> -> vector<16x16xf32>
    %39 = vector.broadcast %1 : vector<1x16xf32> to vector<16x16xf32>
    %40 = arith.addf %38, %39 : vector<16x16xf32>
    %cst_23 = arith.constant dense<0xFF800000> : vector<16xf32>
    %41 = vector.multi_reduction <maximumf>, %40, %cst_23 [1] : vector<16x16xf32> to vector<16xf32>
    %42 = vector.shape_cast %41 : vector<16xf32> to vector<16x1xf32>
    %43 = vector.broadcast %42 : vector<16x1xf32> to vector<16x16xf32>
    %44 = arith.subf %40, %43 : vector<16x16xf32>
    %45 = math.exp %44 : vector<16x16xf32>
    %cst_24 = arith.constant dense<0.000000e+00> : vector<16xf32>
    %46 = vector.multi_reduction <add>, %45, %cst_24 [1] : vector<16x16xf32> to vector<16xf32>
    %47 = vector.shape_cast %46 : vector<16xf32> to vector<16x1xf32>
    %48 = arith.truncf %45 : vector<16x16xf32> to vector<16x16xbf16>
    %cst_25 = arith.constant dense<0.000000e+00> : vector<16x8xf32>
    %49 = tpu.matmul %48, %33, %cst_25 {dimension_numbers = #tpu.dot_dimension_numbers<[1], [0], [0], [1], [0, 0, 1, 1], [], []>} : vector<16x16xbf16>, vector<16x8xbf16>, vector<16x8xf32> -> vector<16x8xf32>
    %50 = tpu.reciprocal %47 {approx = true} : vector<16x1xf32> -> vector<16x1xf32>
    %51 = vector.broadcast %50 : vector<16x1xf32> to vector<16x8xf32>
    %52 = arith.mulf %49, %51 : vector<16x8xf32>
    %53 = vector.extract_strided_slice %52 {offsets = [0, 0], sizes = [8, 8], strides = [1, 1]} : vector<16x8xf32> to vector<8x8xf32>
    %54 = arith.truncf %53 : vector<8x8xf32> to vector<8x8xbf16>
    %c0_26 = arith.constant 0 : index
    %c0_27 = arith.constant 0 : index
    %55 = vector.load %arg21[%c0_26, %c0_27] : memref<8x32xbf16, #tpu.memory_space<vmem>>, vector<8x8xbf16>
    tpu.vector_store %arg21[%c0_26, %c0_27], %54 {strides = array<i32>} : memref<8x32xbf16, #tpu.memory_space<vmem>>, vector<8x8xbf16>,
    %56 = vector.extract_strided_slice %52 {offsets = [8, 0], sizes = [8, 8], strides = [1, 1]} : vector<16x8xf32> to vector<8x8xf32>
    %57 = arith.truncf %56 : vector<8x8xf32> to vector<8x8xbf16>
    %c0_28 = arith.constant 0 : index
    %c8 = arith.constant 8 : index
    %58 = vector.load %arg21[%c0_28, %c8] : memref<8x32xbf16, #tpu.memory_space<vmem>>, vector<8x8xbf16>
    tpu.vector_store %arg21[%c0_28, %c8], %57 {strides = array<i32>} : memref<8x32xbf16, #tpu.memory_space<vmem>>, vector<8x8xbf16>,
    %59 = vector.extract_strided_slice %30 {offsets = [0, 8], sizes = [16, 8], strides = [1, 1]} : vector<16x16xbf16> to vector<16x8xbf16>
    %60 = vector.extract_strided_slice %31 {offsets = [0, 8], sizes = [16, 8], strides = [1, 1]} : vector<16x16xbf16> to vector<16x8xbf16>
    %61 = vector.extract_strided_slice %29 {offsets = [0, 16], sizes = [8, 16], strides = [1, 1]} : vector<8x32xbf16> to vector<8x16xbf16>
    %62 = vector.extract_strided_slice %61 {offsets = [0, 0], sizes = [8, 8], strides = [1, 1]} : vector<8x16xbf16> to vector<8x8xbf16>
    %63 = vector.extract_strided_slice %61 {offsets = [0, 8], sizes = [8, 8], strides = [1, 1]} : vector<8x16xbf16> to vector<8x8xbf16>
    %64 = tpu.concatenate %62, %63 in 0 : vector<8x8xbf16>, vector<8x8xbf16> -> vector<16x8xbf16>
    %cst_29 = arith.constant dense<0.000000e+00> : vector<16x16xf32>
    %65 = tpu.matmul %64, %59, %cst_29 {dimension_numbers = #tpu.dot_dimension_numbers<[1], [1], [0], [0], [0, 0, 1, 0], [], []>} : vector<16x8xbf16>, vector<16x8xbf16>, vector<16x16xf32> -> vector<16x16xf32>
    %66 = vector.broadcast %1 : vector<1x16xf32> to vector<16x16xf32>
    %67 = arith.addf %65, %66 : vector<16x16xf32>
    %cst_30 = arith.constant dense<0xFF800000> : vector<16xf32>
    %68 = vector.multi_reduction <maximumf>, %67, %cst_30 [1] : vector<16x16xf32> to vector<16xf32>
    %69 = vector.shape_cast %68 : vector<16xf32> to vector<16x1xf32>
    %70 = vector.broadcast %69 : vector<16x1xf32> to vector<16x16xf32>
    %71 = arith.subf %67, %70 : vector<16x16xf32>
    %72 = math.exp %71 : vector<16x16xf32>
    %cst_31 = arith.constant dense<0.000000e+00> : vector<16xf32>
    %73 = vector.multi_reduction <add>, %72, %cst_31 [1] : vector<16x16xf32> to vector<16xf32>
    %74 = vector.shape_cast %73 : vector<16xf32> to vector<16x1xf32>
    %75 = arith.truncf %72 : vector<16x16xf32> to vector<16x16xbf16>
    %cst_32 = arith.constant dense<0.000000e+00> : vector<16x8xf32>
    %76 = tpu.matmul %75, %60, %cst_32 {dimension_numbers = #tpu.dot_dimension_numbers<[1], [0], [0], [1], [0, 0, 1, 1], [], []>} : vector<16x16xbf16>, vector<16x8xbf16>, vector<16x8xf32> -> vector<16x8xf32>
    %77 = tpu.reciprocal %74 {approx = true} : vector<16x1xf32> -> vector<16x1xf32>
    %78 = vector.broadcast %77 : vector<16x1xf32> to vector<16x8xf32>
    %79 = arith.mulf %76, %78 : vector<16x8xf32>
    %80 = vector.extract_strided_slice %79 {offsets = [0, 0], sizes = [8, 8], strides = [1, 1]} : vector<16x8xf32> to vector<8x8xf32>
    %81 = arith.truncf %80 : vector<8x8xf32> to vector<8x8xbf16>
    %c0_33 = arith.constant 0 : index
    %c16 = arith.constant 16 : index
    %82 = vector.load %arg21[%c0_33, %c16] : memref<8x32xbf16, #tpu.memory_space<vmem>>, vector<8x8xbf16>
    tpu.vector_store %arg21[%c0_33, %c16], %81 {strides = array<i32>} : memref<8x32xbf16, #tpu.memory_space<vmem>>, vector<8x8xbf16>,
    %83 = vector.extract_strided_slice %79 {offsets = [8, 0], sizes = [8, 8], strides = [1, 1]} : vector<16x8xf32> to vector<8x8xf32>
    %84 = arith.truncf %83 : vector<8x8xf32> to vector<8x8xbf16>
    %c0_34 = arith.constant 0 : index
    %c24 = arith.constant 24 : index
    %85 = vector.load %arg21[%c0_34, %c24] : memref<8x32xbf16, #tpu.memory_space<vmem>>, vector<8x8xbf16>
    tpu.vector_store %arg21[%c0_34, %c24], %84 {strides = array<i32>} : memref<8x32xbf16, #tpu.memory_space<vmem>>, vector<8x8xbf16>,
    %c0_35 = arith.constant 0 : index
    %c0_36 = arith.constant 0 : index
    %86 = vector.load %arg21[%c0_35, %c0_36] : memref<8x32xbf16, #tpu.memory_space<vmem>>, vector<8x32xbf16>
    %c0_37 = arith.constant 0 : index
    %c0_38 = arith.constant 0 : index
    %87 = vector.load %arg7[%c0_37, %c0_38] : memref<32x32xbf16, #tpu.memory_space<vmem>>, vector<32x32xbf16>
    %cst_39 = arith.constant dense<0.000000e+00> : vector<8x32xf32>
    %88 = tpu.matmul %86, %87, %cst_39 {dimension_numbers = #tpu.dot_dimension_numbers<[1], [0], [0], [1], [0, 0, 1, 1], [], []>} : vector<8x32xbf16>, vector<32x32xbf16>, vector<8x32xf32> -> vector<8x32xf32>
    %c0_40 = arith.constant 0 : index
    %c0_41 = arith.constant 0 : index
    %c0_42 = arith.constant 0 : index
    %89 = vector.load %arg20[%c0_40, %c0_41, %c0_42] : memref<1x8x32xf32, #tpu.memory_space<vmem>>, vector<1x8x32xf32>
    %90 = vector.shape_cast %89 : vector<1x8x32xf32> to vector<8x32xf32>
    %91 = vector.shape_cast %88 : vector<8x32xf32> to vector<1x8x32xf32>
    tpu.vector_store %arg20[%c0_40, %c0_41, %c0_42], %91 {strides = array<i32>} : memref<1x8x32xf32, #tpu.memory_space<vmem>>, vector<1x8x32xf32>,
    %92 = arith.truncf %88 : vector<8x32xf32> to vector<8x32xbf16>
    %c0_43 = arith.constant 0 : index
    %c0_44 = arith.constant 0 : index
    %c0_45 = arith.constant 0 : index
    %93 = vector.load %arg3[%c0_43, %c0_44, %c0_45] : memref<1x8x32xbf16, #tpu.memory_space<vmem>>, vector<1x8x32xbf16>
    %94 = vector.shape_cast %93 : vector<1x8x32xbf16> to vector<8x32xbf16>
    %c0_46 = arith.constant 0 : index
    %c0_47 = arith.constant 0 : index
    %95 = vector.load %arg8[%c0_46, %c0_47] : memref<32x32xbf16, #tpu.memory_space<vmem>>, vector<32x32xbf16>
    %c0_48 = arith.constant 0 : index
    %c0_49 = arith.constant 0 : index
    %96 = vector.load %arg9[%c0_48, %c0_49] : memref<32x16xbf16, #tpu.memory_space<vmem>>, vector<32x16xbf16>
    %c0_50 = arith.constant 0 : index
    %c0_51 = arith.constant 0 : index
    %97 = vector.load %arg10[%c0_50, %c0_51] : memref<32x16xbf16, #tpu.memory_space<vmem>>, vector<32x16xbf16>
    %c0_52 = arith.constant 0 : index
    %c0_53 = arith.constant 0 : index
    %98 = vector.load %arg15[%c0_52, %c0_53] : memref<8x8xf32, #tpu.memory_space<vmem>>, vector<8x8xf32>
    %c0_54 = arith.constant 0 : index
    %c0_55 = arith.constant 0 : index
    %99 = vector.load %arg16[%c0_54, %c0_55] : memref<8x8xf32, #tpu.memory_space<vmem>>, vector<8x8xf32>
    %c0_56 = arith.constant 0 : index
    %c0_57 = arith.constant 0 : index
    %100 = vector.load %arg17[%c0_56, %c0_57] : memref<8x8xf32, #tpu.memory_space<vmem>>, vector<8x8xf32>
    %cst_58 = arith.constant dense<0.000000e+00> : vector<8x32xf32>
    %101 = tpu.matmul %94, %95, %cst_58 {dimension_numbers = #tpu.dot_dimension_numbers<[1], [0], [0], [1], [0, 0, 1, 1], [], []>} : vector<8x32xbf16>, vector<32x32xbf16>, vector<8x32xf32> -> vector<8x32xf32>
    %cst_59 = arith.constant dense<0.000000e+00> : vector<8x16xf32>
    %102 = tpu.matmul %92, %96, %cst_59 {dimension_numbers = #tpu.dot_dimension_numbers<[1], [0], [0], [1], [0, 0, 1, 1], [], []>} : vector<8x32xbf16>, vector<32x16xbf16>, vector<8x16xf32> -> vector<8x16xf32>
    %cst_60 = arith.constant dense<0.000000e+00> : vector<8x16xf32>
    %103 = tpu.matmul %92, %97, %cst_60 {dimension_numbers = #tpu.dot_dimension_numbers<[1], [0], [0], [1], [0, 0, 1, 1], [], []>} : vector<8x32xbf16>, vector<32x16xbf16>, vector<8x16xf32> -> vector<8x16xf32>
    %104 = tpu.concatenate %98, %98, %98, %98 in 1 : vector<8x8xf32>, vector<8x8xf32>, vector<8x8xf32>, vector<8x8xf32> -> vector<8x32xf32>
    %105 = tpu.concatenate %99, %99, %99, %99 in 1 : vector<8x8xf32>, vector<8x8xf32>, vector<8x8xf32>, vector<8x8xf32> -> vector<8x32xf32>
    %106 = tpu.concatenate %100, %100, %100, %100 in 1 : vector<8x8xf32>, vector<8x8xf32>, vector<8x8xf32>, vector<8x8xf32> -> vector<8x32xf32>
    %107 = vector.extract_strided_slice %101 {offsets = [0, 4], sizes = [8, 28], strides = [1, 1]} : vector<8x32xf32> to vector<8x28xf32>
    %108 = vector.extract_strided_slice %101 {offsets = [0, 0], sizes = [8, 4], strides = [1, 1]} : vector<8x32xf32> to vector<8x4xf32>
    %109 = tpu.concatenate %107, %108 in 1 : vector<8x28xf32>, vector<8x4xf32> -> vector<8x32xf32>
    %110 = vector.extract_strided_slice %101 {offsets = [0, 28], sizes = [8, 4], strides = [1, 1]} : vector<8x32xf32> to vector<8x4xf32>
    %111 = vector.extract_strided_slice %101 {offsets = [0, 0], sizes = [8, 28], strides = [1, 1]} : vector<8x32xf32> to vector<8x28xf32>
    %112 = tpu.concatenate %110, %111 in 1 : vector<8x4xf32>, vector<8x28xf32> -> vector<8x32xf32>
    %113 = arith.mulf %101, %104 : vector<8x32xf32>
    %114 = arith.mulf %109, %105 : vector<8x32xf32>
    %115 = arith.addf %113, %114 : vector<8x32xf32>
    %116 = arith.mulf %112, %106 : vector<8x32xf32>
    %117 = arith.addf %115, %116 : vector<8x32xf32>
    %118 = arith.truncf %117 : vector<8x32xf32> to vector<8x32xbf16>
    %119 = arith.truncf %102 : vector<8x16xf32> to vector<8x16xbf16>
    %120 = arith.truncf %103 : vector<8x16xf32> to vector<8x16xbf16>
    %121 = vector.extract_strided_slice %119 {offsets = [0, 0], sizes = [8, 8], strides = [1, 1]} : vector<8x16xbf16> to vector<8x8xbf16>
    %122 = vector.extract_strided_slice %120 {offsets = [0, 0], sizes = [8, 8], strides = [1, 1]} : vector<8x16xbf16> to vector<8x8xbf16>
    %123 = vector.extract_strided_slice %118 {offsets = [0, 0], sizes = [8, 16], strides = [1, 1]} : vector<8x32xbf16> to vector<8x16xbf16>
    %124 = vector.extract_strided_slice %123 {offsets = [0, 0], sizes = [8, 8], strides = [1, 1]} : vector<8x16xbf16> to vector<8x8xbf16>
    %125 = vector.extract_strided_slice %123 {offsets = [0, 8], sizes = [8, 8], strides = [1, 1]} : vector<8x16xbf16> to vector<8x8xbf16>
    %126 = tpu.concatenate %124, %125 in 0 : vector<8x8xbf16>, vector<8x8xbf16> -> vector<16x8xbf16>
    %cst_61 = arith.constant dense<0.000000e+00> : vector<16x8xf32>
    %127 = tpu.matmul %126, %121, %cst_61 {dimension_numbers = #tpu.dot_dimension_numbers<[1], [1], [0], [0], [0, 0, 1, 0], [], []>} : vector<16x8xbf16>, vector<8x8xbf16>, vector<16x8xf32> -> vector<16x8xf32>
    %cst_62 = arith.constant dense<0xFF800000> : vector<16xf32>
    %128 = vector.multi_reduction <maximumf>, %127, %cst_62 [1] : vector<16x8xf32> to vector<16xf32>
    %129 = vector.shape_cast %128 : vector<16xf32> to vector<16x1xf32>
    %130 = vector.broadcast %129 : vector<16x1xf32> to vector<16x8xf32>
    %131 = arith.subf %127, %130 : vector<16x8xf32>
    %132 = math.exp %131 : vector<16x8xf32>
    %cst_63 = arith.constant dense<0.000000e+00> : vector<16xf32>
    %133 = vector.multi_reduction <add>, %132, %cst_63 [1] : vector<16x8xf32> to vector<16xf32>
    %134 = vector.shape_cast %133 : vector<16xf32> to vector<16x1xf32>
    %135 = arith.truncf %132 : vector<16x8xf32> to vector<16x8xbf16>
    %cst_64 = arith.constant dense<0.000000e+00> : vector<16x8xf32>
    %136 = tpu.matmul %135, %122, %cst_64 {dimension_numbers = #tpu.dot_dimension_numbers<[1], [0], [0], [1], [0, 0, 1, 1], [], []>} : vector<16x8xbf16>, vector<8x8xbf16>, vector<16x8xf32> -> vector<16x8xf32>
    %137 = tpu.reciprocal %134 {approx = true} : vector<16x1xf32> -> vector<16x1xf32>
    %138 = vector.broadcast %137 : vector<16x1xf32> to vector<16x8xf32>
    %139 = arith.mulf %136, %138 : vector<16x8xf32>
    %140 = vector.extract_strided_slice %139 {offsets = [0, 0], sizes = [8, 8], strides = [1, 1]} : vector<16x8xf32> to vector<8x8xf32>
    %141 = arith.truncf %140 : vector<8x8xf32> to vector<8x8xbf16>
    %c0_65 = arith.constant 0 : index
    %c0_66 = arith.constant 0 : index
    %142 = vector.load %arg22[%c0_65, %c0_66] : memref<8x32xbf16, #tpu.memory_space<vmem>>, vector<8x8xbf16>
    tpu.vector_store %arg22[%c0_65, %c0_66], %141 {strides = array<i32>} : memref<8x32xbf16, #tpu.memory_space<vmem>>, vector<8x8xbf16>,
    %143 = vector.extract_strided_slice %139 {offsets = [8, 0], sizes = [8, 8], strides = [1, 1]} : vector<16x8xf32> to vector<8x8xf32>
    %144 = arith.truncf %143 : vector<8x8xf32> to vector<8x8xbf16>
    %c0_67 = arith.constant 0 : index
    %c8_68 = arith.constant 8 : index
    %145 = vector.load %arg22[%c0_67, %c8_68] : memref<8x32xbf16, #tpu.memory_space<vmem>>, vector<8x8xbf16>
    tpu.vector_store %arg22[%c0_67, %c8_68], %144 {strides = array<i32>} : memref<8x32xbf16, #tpu.memory_space<vmem>>, vector<8x8xbf16>,
    %146 = vector.extract_strided_slice %119 {offsets = [0, 8], sizes = [8, 8], strides = [1, 1]} : vector<8x16xbf16> to vector<8x8xbf16>
    %147 = vector.extract_strided_slice %120 {offsets = [0, 8], sizes = [8, 8], strides = [1, 1]} : vector<8x16xbf16> to vector<8x8xbf16>
    %148 = vector.extract_strided_slice %118 {offsets = [0, 16], sizes = [8, 16], strides = [1, 1]} : vector<8x32xbf16> to vector<8x16xbf16>
    %149 = vector.extract_strided_slice %148 {offsets = [0, 0], sizes = [8, 8], strides = [1, 1]} : vector<8x16xbf16> to vector<8x8xbf16>
    %150 = vector.extract_strided_slice %148 {offsets = [0, 8], sizes = [8, 8], strides = [1, 1]} : vector<8x16xbf16> to vector<8x8xbf16>
    %151 = tpu.concatenate %149, %150 in 0 : vector<8x8xbf16>, vector<8x8xbf16> -> vector<16x8xbf16>
    %cst_69 = arith.constant dense<0.000000e+00> : vector<16x8xf32>
    %152 = tpu.matmul %151, %146, %cst_69 {dimension_numbers = #tpu.dot_dimension_numbers<[1], [1], [0], [0], [0, 0, 1, 0], [], []>} : vector<16x8xbf16>, vector<8x8xbf16>, vector<16x8xf32> -> vector<16x8xf32>
    %cst_70 = arith.constant dense<0xFF800000> : vector<16xf32>
    %153 = vector.multi_reduction <maximumf>, %152, %cst_70 [1] : vector<16x8xf32> to vector<16xf32>
    %154 = vector.shape_cast %153 : vector<16xf32> to vector<16x1xf32>
    %155 = vector.broadcast %154 : vector<16x1xf32> to vector<16x8xf32>
    %156 = arith.subf %152, %155 : vector<16x8xf32>
    %157 = math.exp %156 : vector<16x8xf32>
    %cst_71 = arith.constant dense<0.000000e+00> : vector<16xf32>
    %158 = vector.multi_reduction <add>, %157, %cst_71 [1] : vector<16x8xf32> to vector<16xf32>
    %159 = vector.shape_cast %158 : vector<16xf32> to vector<16x1xf32>
    %160 = arith.truncf %157 : vector<16x8xf32> to vector<16x8xbf16>
    %cst_72 = arith.constant dense<0.000000e+00> : vector<16x8xf32>
    %161 = tpu.matmul %160, %147, %cst_72 {dimension_numbers = #tpu.dot_dimension_numbers<[1], [0], [0], [1], [0, 0, 1, 1], [], []>} : vector<16x8xbf16>, vector<8x8xbf16>, vector<16x8xf32> -> vector<16x8xf32>
    %162 = tpu.reciprocal %159 {approx = true} : vector<16x1xf32> -> vector<16x1xf32>
    %163 = vector.broadcast %162 : vector<16x1xf32> to vector<16x8xf32>
    %164 = arith.mulf %161, %163 : vector<16x8xf32>
    %165 = vector.extract_strided_slice %164 {offsets = [0, 0], sizes = [8, 8], strides = [1, 1]} : vector<16x8xf32> to vector<8x8xf32>
    %166 = arith.truncf %165 : vector<8x8xf32> to vector<8x8xbf16>
    %c0_73 = arith.constant 0 : index
    %c16_74 = arith.constant 16 : index
    %167 = vector.load %arg22[%c0_73, %c16_74] : memref<8x32xbf16, #tpu.memory_space<vmem>>, vector<8x8xbf16>
    tpu.vector_store %arg22[%c0_73, %c16_74], %166 {strides = array<i32>} : memref<8x32xbf16, #tpu.memory_space<vmem>>, vector<8x8xbf16>,
    %168 = vector.extract_strided_slice %164 {offsets = [8, 0], sizes = [8, 8], strides = [1, 1]} : vector<16x8xf32> to vector<8x8xf32>
    %169 = arith.truncf %168 : vector<8x8xf32> to vector<8x8xbf16>
    %c0_75 = arith.constant 0 : index
    %c24_76 = arith.constant 24 : index
    %170 = vector.load %arg22[%c0_75, %c24_76] : memref<8x32xbf16, #tpu.memory_space<vmem>>, vector<8x8xbf16>
    tpu.vector_store %arg22[%c0_75, %c24_76], %169 {strides = array<i32>} : memref<8x32xbf16, #tpu.memory_space<vmem>>, vector<8x8xbf16>,
    %c0_77 = arith.constant 0 : index
    %c0_78 = arith.constant 0 : index
    %171 = vector.load %arg22[%c0_77, %c0_78] : memref<8x32xbf16, #tpu.memory_space<vmem>>, vector<8x32xbf16>
    %c0_79 = arith.constant 0 : index
    %c0_80 = arith.constant 0 : index
    %172 = vector.load %arg11[%c0_79, %c0_80] : memref<32x32xbf16, #tpu.memory_space<vmem>>, vector<32x32xbf16>
    %cst_81 = arith.constant dense<0.000000e+00> : vector<8x32xf32>
    %173 = tpu.matmul %171, %172, %cst_81 {dimension_numbers = #tpu.dot_dimension_numbers<[1], [0], [0], [1], [0, 0, 1, 1], [], []>} : vector<8x32xbf16>, vector<32x32xbf16>, vector<8x32xf32> -> vector<8x32xf32>
    %c0_82 = arith.constant 0 : index
    %c0_83 = arith.constant 0 : index
    %c0_84 = arith.constant 0 : index
    %174 = vector.load %arg19[%c0_82, %c0_83, %c0_84] : memref<1x8x32xf32, #tpu.memory_space<vmem>>, vector<1x8x32xf32>
    %175 = vector.shape_cast %174 : vector<1x8x32xf32> to vector<8x32xf32>
    %176 = vector.shape_cast %173 : vector<8x32xf32> to vector<1x8x32xf32>
    tpu.vector_store %arg19[%c0_82, %c0_83, %c0_84], %176 {strides = array<i32>} : memref<1x8x32xf32, #tpu.memory_space<vmem>>, vector<1x8x32xf32>,
    return
  }
  func.func @transform_0(%arg0: i32) -> (i32, i32, i32) {
    %c0_i32 = arith.constant 0 : i32
    %c0_i32_0 = arith.constant 0 : i32
    %c0_i32_1 = arith.constant 0 : i32
    %c0_i32_2 = arith.constant 0 : i32
    return %c0_i32, %c0_i32_0, %c0_i32_1 : i32, i32, i32
  }
  func.func @transform_1(%arg0: i32) -> (i32, i32, i32) {
    %c0_i32 = arith.constant 0 : i32
    %c0_i32_0 = arith.constant 0 : i32
    %c0_i32_1 = arith.constant 0 : i32
    return %arg0, %c0_i32, %c0_i32_0 : i32, i32, i32
  }
  func.func @transform_2(%arg0: i32) -> (i32, i32, i32) {
    %c0_i32 = arith.constant 0 : i32
    %c0_i32_0 = arith.constant 0 : i32
    %c0_i32_1 = arith.constant 0 : i32
    return %arg0, %c0_i32, %c0_i32_0 : i32, i32, i32
  }
  func.func @transform_3(%arg0: i32) -> (i32, i32) {
    %c0_i32 = arith.constant 0 : i32
    %c0_i32_0 = arith.constant 0 : i32
    %c0_i32_1 = arith.constant 0 : i32
    return %c0_i32, %c0_i32_0 : i32, i32
  }
  func.func @transform_4(%arg0: i32) -> (i32, i32) {
    %c0_i32 = arith.constant 0 : i32
    %c0_i32_0 = arith.constant 0 : i32
    %c0_i32_1 = arith.constant 0 : i32
    return %c0_i32, %c0_i32_0 : i32, i32
  }
  func.func @transform_5(%arg0: i32) -> (i32, i32) {
    %c0_i32 = arith.constant 0 : i32
    %c0_i32_0 = arith.constant 0 : i32
    %c0_i32_1 = arith.constant 0 : i32
    return %c0_i32, %c0_i32_0 : i32, i32
  }
  func.func @transform_6(%arg0: i32) -> (i32, i32) {
    %c0_i32 = arith.constant 0 : i32
    %c0_i32_0 = arith.constant 0 : i32
    %c0_i32_1 = arith.constant 0 : i32
    return %c0_i32, %c0_i32_0 : i32, i32
  }
  func.func @transform_7(%arg0: i32) -> (i32, i32) {
    %c0_i32 = arith.constant 0 : i32
    %c0_i32_0 = arith.constant 0 : i32
    %c0_i32_1 = arith.constant 0 : i32
    return %c0_i32, %c0_i32_0 : i32, i32
  }
  func.func @transform_8(%arg0: i32) -> (i32, i32) {
    %c0_i32 = arith.constant 0 : i32
    %c0_i32_0 = arith.constant 0 : i32
    %c0_i32_1 = arith.constant 0 : i32
    return %c0_i32, %c0_i32_0 : i32, i32
  }
  func.func @transform_9(%arg0: i32) -> (i32, i32) {
    %c0_i32 = arith.constant 0 : i32
    %c0_i32_0 = arith.constant 0 : i32
    %c0_i32_1 = arith.constant 0 : i32
    return %c0_i32, %c0_i32_0 : i32, i32
  }
  func.func @transform_10(%arg0: i32) -> (i32, i32) {
    %c0_i32 = arith.constant 0 : i32
    %c0_i32_0 = arith.constant 0 : i32
    %c0_i32_1 = arith.constant 0 : i32
    return %c0_i32, %c0_i32_0 : i32, i32
  }
  func.func @transform_11(%arg0: i32) -> (i32, i32) {
    %c0_i32 = arith.constant 0 : i32
    %c0_i32_0 = arith.constant 0 : i32
    %c0_i32_1 = arith.constant 0 : i32
    return %c0_i32, %c0_i32_0 : i32, i32
  }
  func.func @transform_12(%arg0: i32) -> (i32, i32) {
    %c0_i32 = arith.constant 0 : i32
    %c0_i32_0 = arith.constant 0 : i32
    %c0_i32_1 = arith.constant 0 : i32
    return %c0_i32, %c0_i32_0 : i32, i32
  }
  func.func @transform_13(%arg0: i32) -> (i32, i32) {
    %c0_i32 = arith.constant 0 : i32
    %c0_i32_0 = arith.constant 0 : i32
    %c0_i32_1 = arith.constant 0 : i32
    return %c0_i32, %c0_i32_0 : i32, i32
  }
  func.func @transform_14(%arg0: i32) -> (i32, i32) {
    %c0_i32 = arith.constant 0 : i32
    %c0_i32_0 = arith.constant 0 : i32
    %c0_i32_1 = arith.constant 0 : i32
    return %c0_i32, %c0_i32_0 : i32, i32
  }
  func.func @transform_15(%arg0: i32) -> (i32, i32) {
    %c0_i32 = arith.constant 0 : i32
    %c0_i32_0 = arith.constant 0 : i32
    %c0_i32_1 = arith.constant 0 : i32
    return %c0_i32, %c0_i32_0 : i32, i32
  }
  func.func @transform_16(%arg0: i32) -> (i32, i32) {
    %c0_i32 = arith.constant 0 : i32
    %c0_i32_0 = arith.constant 0 : i32
    %c0_i32_1 = arith.constant 0 : i32
    return %c0_i32, %c0_i32_0 : i32, i32
  }
  func.func @transform_17(%arg0: i32) -> (i32, i32, i32) {
    %c0_i32 = arith.constant 0 : i32
    %c0_i32_0 = arith.constant 0 : i32
    %c0_i32_1 = arith.constant 0 : i32
    return %arg0, %c0_i32, %c0_i32_0 : i32, i32, i32
  }
  func.func @transform_18(%arg0: i32) -> (i32, i32, i32) {
    %c0_i32 = arith.constant 0 : i32
    %c0_i32_0 = arith.constant 0 : i32
    %c0_i32_1 = arith.constant 0 : i32
    return %arg0, %c0_i32, %c0_i32_0 : i32, i32, i32
  }
  func.func @transform_19(%arg0: i32) -> (i32, i32, i32) {
    %c0_i32 = arith.constant 0 : i32
    %c0_i32_0 = arith.constant 0 : i32
    %c0_i32_1 = arith.constant 0 : i32
    return %arg0, %c0_i32, %c0_i32_0 : i32, i32, i32
  }
}

</mosaic_0001>

<llo_original>
// kernel: tpu_custom_call.1
$region0: #{tpu_custom_call.1}
  #allocation0 [shape = 'u32[]', space=smem, size = 0x4, offset = 0x4, fixed_abs, tag = 'smem constant byte address 0x4 - core index']
  #allocation1 [shape = 'u32[144,128]{1,0:T(1,128)}', space=vmem, size = 0x12000, scoped, tag = 'internal scratch']
  %s0 = inlined_call_operand.hbm [shape: f32[8,128], index: 0, kind: input, shape index: {}]
  %s1 = inlined_call_operand.hbm [shape: f32[8,128], index: 1, kind: output, shape index: {}]
  %s2 = sld [smem:[#allocation0]]
  $region18: #{tpu_custom_call.1} parent=0
    _
  %s4 = ssub.s32 1, %s2
  %s5 = scalar_select 0, %s4, %s2
  $region1: #{tpu_custom_call.1} parent=0
    #allocation2 [shape = 'u8[4096]{0}', space=vmem, size = 0x1000, scoped, tag = 'input window, operand 0, single buffered']
    #allocation3 [shape = 's32[1]{0}', space=sflag, size = 0x4, scoped, tag = 'scoped memory for tpu_custom_call.1']
    #allocation4 [shape = 's32[1]{0}', space=sflag, size = 0x4, scoped, tag = 'scoped memory for tpu_custom_call.1']
    #allocation5 [shape = 'u8[4096]{0}', space=vmem, size = 0x1000, scoped, tag = 'output window, operand 0, single buffered']
    %6 = vsyncpa [#allocation3], 0
    %7 = vsyncpa [#allocation4], 0
    // Predicated region
    $region2: #{tpu_custom_call.1} parent=1 // pred_check
      _
    $region3: #{tpu_custom_call.1} parent=1 // pred_check_branch
      %9 = sbr.rel (0) target = $region5
    $region4: #{tpu_custom_call.1} parent=1 // pred_region
      %s11 = ssub.s32 128, 128
      %12 = vsyncadd [#allocation3], %s11
      %s14 = sshll.u32 [#allocation2], 4
      %s15 = int_to_ptr.vmem [resolvable:$true] %s14
      %17 = dma.hbm_to_vmem [thread:$0]  %s0, 128, %s15, [#allocation3]
    $region5: #{tpu_custom_call.1} parent=1 // pred_fallthru
      _
    // Predicated region
    $region6: #{tpu_custom_call.1} parent=1 // pred_check
      _
    $region7: #{tpu_custom_call.1} parent=1 // pred_check_branch
      %19 = sbr.rel (0) target = $region9
    $region8: #{tpu_custom_call.1} parent=1 // pred_region
      %20 = dma.done [#allocation3], 128
    $region9: #{tpu_custom_call.1} parent=1 // pred_fallthru
      _
    %v21 = vld [vmem:[#allocation2] sm:$0xff]
    %22 = vrot.lane.b32.xlu0 %v21, 1
    %v23 = vpop.permute.xlu0 %22
    %24 = vst [vmem:[#allocation5] sm:$0xff] %v23
    // Predicated region
    $region10: #{tpu_custom_call.1} parent=1 // pred_check
      _
    $region11: #{tpu_custom_call.1} parent=1 // pred_check_branch
      %26 = sbr.rel (0) target = $region13
    $region12: #{tpu_custom_call.1} parent=1 // pred_region
      %s28 = ssub.s32 128, 128
      %29 = vsyncadd [#allocation4], %s28
      %s31 = sshll.u32 [#allocation5], 4
      %s32 = int_to_ptr.vmem [resolvable:$true] %s31
      %34 = dma.vmem_to_hbm [thread:$0]  %s32, 128, %s1, [#allocation4]
    $region13: #{tpu_custom_call.1} parent=1 // pred_fallthru
      _
    // Predicated region
    $region14: #{tpu_custom_call.1} parent=1 // pred_check
      _
    $region15: #{tpu_custom_call.1} parent=1 // pred_check_branch
      %36 = sbr.rel (0) target = $region17
    $region16: #{tpu_custom_call.1} parent=1 // pred_region
      %37 = dma.done [#allocation4], 128
    $region17: #{tpu_custom_call.1} parent=1 // pred_fallthru
      _
    %38 = vsyncpa [#allocation3], 1
    %39 = vsyncpa [#allocation4], 1

// kernel: tpu_custom_call.1
$region0: #{tpu_custom_call.1}
  #allocation0 [shape = 'u32[]', space=smem, size = 0x4, offset = 0x4, fixed_abs, tag = 'smem constant byte address 0x4 - core index']
  #allocation1 [shape = 'u32[144,128]{1,0:T(1,128)}', space=vmem, size = 0x12000, scoped, tag = 'internal scratch']
  %s0 = inlined_call_operand.hbm [shape: f32[8,128], index: 0, kind: input, shape index: {}]
  %s1 = inlined_call_operand.hbm [shape: f32[8,128], index: 1, kind: output, shape index: {}]
  %s2 = sld [smem:[#allocation0]]
  $region41: #{tpu_custom_call.1} parent=0
    _
  %s4 = ssub.s32 1, %s2
  %s5 = scalar_select 0, %s4, %s2
  $region1: #{tpu_custom_call.1} parent=0
    #allocation2 [shape = 'u8[4096]{0}', space=vmem, size = 0x1000, scoped, tag = 'input window, operand 0, single buffered']
    #allocation3 [shape = 's32[2]{0}', space=sflag, size = 0x8, scoped, tag = 'scoped memory for tpu_custom_call.1']
    #allocation4 [shape = 's32[2]{0}', space=sflag, size = 0x8, scoped, tag = 'scoped memory for tpu_custom_call.1']
    #allocation5 [shape = 'u8[4096]{0}', space=vmem, size = 0x1000, scoped, tag = 'output window, operand 0, single buffered']
    %6 = vsyncpa [#allocation3], 0
    %7 = vsyncpa [#allocation4], 0
    loop: start=0, step=1, limit=4
    $region2: #{tpu_custom_call.1} parent=1 // loop_pre_header
      _
    $region3: #{tpu_custom_call.1} parent=1 // loop_header
      %s9 = sphi 0, %s13
      %p10 = scmp.ge.s32.totalorder %s9, 4
      %s17 = sphi 0, %s17
      %s19 = sphi 0, %s17
      %s20 = sphi 0, %s19
      %s34 = sphi 0, %s20
      %s38 = sphi 0, %s38
      %s40 = sphi 0, %s38
      %s41 = sphi 0, %s40
      %s55 = sphi 0, %s41
    $region4: #{tpu_custom_call.1} parent=1 // loop_header_branch
      %12 = sbr.rel (%p10) target = $region8
    $region5: #{tpu_custom_call.1} parent=1 // loop_body
      %s14 = ssub.s32 %s9, 1
      %s15 = ssub.s32 %s9, 2
      %s16 = sadd.s32 %s9, 1
      %s18 = sadd.s32 %s17, 1
      %p21 = scmp.eq.s32.totalorder %s9, 1
      %p22 = scmp.ne.s32.totalorder %s17, %s19
      %p23 = scmp.eq.s32.totalorder %s9, 0
      %p24 = por %p22, %p23
      %p25 = scmp.ne.s32.totalorder %s17, %s19
      %p26 = scmp.eq.s32.totalorder %s14, 1
      %p27 = por %p25, %p26
      %p28 = scmp.ne.s32.totalorder %s19, %s20
      %p29 = scmp.eq.s32.totalorder %s14, 0
      %p30 = por %p28, %p29
      %p31 = scmp.ne.s32.totalorder %s19, %s20
      %p32 = scmp.eq.s32.totalorder %s15, 1
      %p33 = por %p31, %p32
      %p35 = scmp.ne.s32.totalorder %s20, %s34
      %p36 = scmp.eq.s32.totalorder %s15, 0
      %p37 = por %p35, %p36
      %s39 = sadd.s32 %s38, 1
      %p42 = scmp.eq.s32.totalorder %s9, 1
      %p43 = scmp.ne.s32.totalorder %s38, %s40
      %p44 = scmp.eq.s32.totalorder %s9, 0
      %p45 = por %p43, %p44
      %p46 = scmp.ne.s32.totalorder %s38, %s40
      %p47 = scmp.eq.s32.totalorder %s14, 1
      %p48 = por %p46, %p47
      %p49 = scmp.ne.s32.totalorder %s40, %s41
      %p50 = scmp.eq.s32.totalorder %s14, 0
      %p51 = por %p49, %p50
      %p52 = scmp.ne.s32.totalorder %s40, %s41
      %p53 = scmp.eq.s32.totalorder %s15, 1
      %p54 = por %p52, %p53
      %p56 = scmp.ne.s32.totalorder %s41, %s55
      %p57 = scmp.eq.s32.totalorder %s15, 0
      %p58 = por %p56, %p57
      %p59 = scmp.le.s32.totalorder 1, %s9
      %p60 = scmp.lt.s32.totalorder %s9, 3
      %p61 = pnand %p59, %p60
      %p62 = pneg %p61
      // Predicated region
      $region9: #{tpu_custom_call.1} parent=5 // pred_check
        _
      $region10: #{tpu_custom_call.1} parent=5 // pred_check_branch
        %64 = sbr.rel (%p61) target = $region12
      $region11: #{tpu_custom_call.1} parent=5 // pred_region
        %s65 = ssub.s32 %s9, 1
        // Predicated region
        $region13: #{tpu_custom_call.1} parent=11 // pred_check
          %p66 = pneg %p30
        $region14: #{tpu_custom_call.1} parent=11 // pred_check_branch
          %68 = sbr.rel (%p66) target = $region16
        $region15: #{tpu_custom_call.1} parent=11 // pred_region
          %s70 = ssub.s32 128, 128
          %71 = vsyncadd [#allocation3], %s70
          %s73 = sshll.u32 [#allocation2], 4
          %s74 = int_to_ptr.vmem [resolvable:$true] %s73
          %76 = dma.hbm_to_vmem [thread:$0]  %s0, 128, %s74, [#allocation3]
        $region16: #{tpu_custom_call.1} parent=11 // pred_fallthru
          _
      $region12: #{tpu_custom_call.1} parent=5 // pred_fallthru
        _
      %p77 = scmp.lt.s32.totalorder %s9, 2
      // Predicated region
      $region17: #{tpu_custom_call.1} parent=5 // pred_check
        %p78 = pneg %p77
      $region18: #{tpu_custom_call.1} parent=5 // pred_check_branch
        %80 = sbr.rel (%p78) target = $region20
      $region19: #{tpu_custom_call.1} parent=5 // pred_region
        _
      $region20: #{tpu_custom_call.1} parent=5 // pred_fallthru
        _
      %p81 = scmp.le.s32.totalorder 1, %s9
      %p82 = scmp.lt.s32.totalorder %s9, 3
      %p83 = pnand %p81, %p82
      %p84 = pneg %p83
      // Predicated region
      $region21: #{tpu_custom_call.1} parent=5 // pred_check
        _
      $region22: #{tpu_custom_call.1} parent=5 // pred_check_branch
        %86 = sbr.rel (%p83) target = $region24
      $region23: #{tpu_custom_call.1} parent=5 // pred_region
        %s87 = ssub.s32 %s9, 1
        // Predicated region
        $region25: #{tpu_custom_call.1} parent=23 // pred_check
          %p88 = pneg %p30
        $region26: #{tpu_custom_call.1} parent=23 // pred_check_branch
          %90 = sbr.rel (%p88) target = $region28
        $region27: #{tpu_custom_call.1} parent=23 // pred_region
          %91 = dma.done [#allocation3], 128
        $region28: #{tpu_custom_call.1} parent=23 // pred_fallthru
          _
        %p92 = pneg %p30
        %p93 = pneg %p27
        %p94 = pneg %p51
        %p95 = pneg %p48
        %v96 = vld [vmem:[#allocation2] sm:$0xff]
        %v97 = vadd.f32 %v96, 1.0
        %98 = vst [vmem:[#allocation5] sm:$0xff] %v97
        // Predicated region
        $region29: #{tpu_custom_call.1} parent=23 // pred_check
          %p99 = pneg %p48
        $region30: #{tpu_custom_call.1} parent=23 // pred_check_branch
          %101 = sbr.rel (%p99) target = $region32
        $region31: #{tpu_custom_call.1} parent=23 // pred_region
          %s103 = ssub.s32 128, 128
          %104 = vsyncadd [#allocation4], %s103
          %s106 = sshll.u32 [#allocation5], 4
          %s107 = int_to_ptr.vmem [resolvable:$true] %s106
          %109 = dma.vmem_to_hbm [thread:$0]  %s107, 128, %s1, [#allocation4]
        $region32: #{tpu_custom_call.1} parent=23 // pred_fallthru
          _
        // Predicated region
        $region33: #{tpu_custom_call.1} parent=23 // pred_check
          %p110 = pneg %p48
        $region34: #{tpu_custom_call.1} parent=23 // pred_check_branch
          %112 = sbr.rel (%p110) target = $region36
        $region35: #{tpu_custom_call.1} parent=23 // pred_region
          %113 = dma.done [#allocation4], 128
        $region36: #{tpu_custom_call.1} parent=23 // pred_fallthru
          _
      $region24: #{tpu_custom_call.1} parent=5 // pred_fallthru
        _
      %p114 = scmp.le.s32.totalorder 2, %s9
      // Predicated region
      $region37: #{tpu_custom_call.1} parent=5 // pred_check
        %p115 = pneg %p114
      $region38: #{tpu_custom_call.1} parent=5 // pred_check_branch
        %117 = sbr.rel (%p115) target = $region40
      $region39: #{tpu_custom_call.1} parent=5 // pred_region
        %s118 = ssub.s32 %s9, 2
      $region40: #{tpu_custom_call.1} parent=5 // pred_fallthru
        _
    $region6: #{tpu_custom_call.1} parent=1 // loop_footer
      %s13 = sadd.s32 1, %s9
    $region7: #{tpu_custom_call.1} parent=1 // loop_footer_branch
      %8 = sbr.rel target = $region3
    $region8: #{tpu_custom_call.1} parent=1 // loop_exit
      _
    %119 = vsyncpa [#allocation3], 1
    %s120 = scalar_lea.sflag [#allocation3], 1
    %121 = vsyncpa %s120, 1
    %122 = vsyncpa [#allocation4], 1
    %s123 = scalar_lea.sflag [#allocation4], 1
    %124 = vsyncpa %s123, 1

// kernel: tpu_custom_call.1
$region0: #{tpu_custom_call.1}
  #allocation0 [shape = 'u32[]', space=smem, size = 0x4, offset = 0x4, fixed_abs, tag = 'smem constant byte address 0x4 - core index']
  #allocation1 [shape = 'u32[144,128]{1,0:T(1,128)}', space=vmem, size = 0x12000, scoped, tag = 'internal scratch']
  #allocation2 [shape = 'bf16[8,32]{1,0:T(8,128)(2,1)}', space=vmem, size = 0x800, scoped, tag = 'scratch operand']
  #allocation3 [shape = 'bf16[8,32]{1,0:T(8,128)(2,1)}', space=vmem, size = 0x800, scoped, tag = 'scratch operand']
  %s0 = inlined_call_operand.vmem [shape: bf16[1,8,32], index: 0, kind: input, shape index: {}]
  %s1 = inlined_call_operand.vmem [shape: bf16[2,16,32], index: 1, kind: input, shape index: {}]
  %s2 = inlined_call_operand.vmem [shape: bf16[2,8,32], index: 2, kind: input, shape index: {}]
  %s3 = inlined_call_operand.vmem [shape: bf16[32,32], index: 3, kind: input, shape index: {}]
  %s4 = inlined_call_operand.vmem [shape: bf16[32,16], index: 4, kind: input, shape index: {}]
  %s5 = inlined_call_operand.vmem [shape: bf16[32,16], index: 5, kind: input, shape index: {}]
  %s6 = inlined_call_operand.vmem [shape: bf16[32,32], index: 6, kind: input, shape index: {}]
  %s7 = inlined_call_operand.vmem [shape: bf16[32,32], index: 7, kind: input, shape index: {}]
  %s8 = inlined_call_operand.vmem [shape: bf16[32,16], index: 8, kind: input, shape index: {}]
  %s9 = inlined_call_operand.vmem [shape: bf16[32,16], index: 9, kind: input, shape index: {}]
  %s10 = inlined_call_operand.vmem [shape: bf16[32,32], index: 10, kind: input, shape index: {}]
  %s11 = inlined_call_operand.vmem [shape: f32[16,8], index: 11, kind: input, shape index: {}]
  %s12 = inlined_call_operand.vmem [shape: f32[16,8], index: 12, kind: input, shape index: {}]
  %s13 = inlined_call_operand.vmem [shape: f32[16,8], index: 13, kind: input, shape index: {}]
  %s14 = inlined_call_operand.vmem [shape: f32[8,8], index: 14, kind: input, shape index: {}]
  %s15 = inlined_call_operand.vmem [shape: f32[8,8], index: 15, kind: input, shape index: {}]
  %s16 = inlined_call_operand.vmem [shape: f32[8,8], index: 16, kind: input, shape index: {}]
  %s17 = inlined_call_operand.vmem [shape: f32[2,1,16], index: 17, kind: input, shape index: {}]
  %s18 = inlined_call_operand.hbm [shape: f32[2,8,32], index: 18, kind: output, shape index: {0}]
  %s19 = inlined_call_operand.hbm [shape: f32[2,8,32], index: 19, kind: output, shape index: {1}]
  %20 = xla_tuple %s18, %s19
  %s21 = sld [smem:[#allocation0]]
  $region113: #{tpu_custom_call.1} parent=0
    _
  %s23 = ssub.s32 1, %s21
  %s24 = scalar_select 0, %s23, %s21
  $region1: #{tpu_custom_call.1} parent=0
    #allocation4 [shape = 'u8[8192]{0}', space=vmem, size = 0x2000, scoped, tag = 'output window, operand 0']
    #allocation5 [shape = 's32[2]{0}', space=sflag, size = 0x8, scoped, tag = 'scoped memory for tpu_custom_call.1']
    #allocation6 [shape = 'u8[8192]{0}', space=vmem, size = 0x2000, scoped, tag = 'output window, operand 1']
    #allocation7 [shape = 's32[2]{0}', space=sflag, size = 0x8, scoped, tag = 'scoped memory for tpu_custom_call.1']
    %25 = vsyncpa [#allocation5], 0
    %s26 = scalar_lea.sflag [#allocation5], 1
    %27 = vsyncpa %s26, 0
    %28 = vsyncpa [#allocation7], 0
    %s29 = scalar_lea.sflag [#allocation7], 1
    %30 = vsyncpa %s29, 0
    loop: start=0, step=1, limit=4
    $region2: #{tpu_custom_call.1} parent=1 // loop_pre_header
      _
    $region3: #{tpu_custom_call.1} parent=1 // loop_header
      %s32 = sphi 0, %s36
      %p33 = scmp.ge.s32.totalorder %s32, 4
      %s40 = sphi 0, %s40
      %s42 = sphi 0, %s40
      %s43 = sphi 0, %s42
      %s57 = sphi 0, %s43
      %s63 = sphi 0, %s65
      %s66 = sphi 0, %s63
      %s67 = sphi 0, %s66
      %s83 = sphi 0, %s67
      %s89 = sphi 0, %s91
      %s92 = sphi 0, %s89
      %s93 = sphi 0, %s92
      %s109 = sphi 0, %s93
      %s113 = sphi 0, %s113
      %s115 = sphi 0, %s113
      %s116 = sphi 0, %s115
      %s130 = sphi 0, %s116
      %s134 = sphi 0, %s134
      %s136 = sphi 0, %s134
      %s137 = sphi 0, %s136
      %s151 = sphi 0, %s137
      %s155 = sphi 0, %s155
      %s157 = sphi 0, %s155
      %s158 = sphi 0, %s157
      %s172 = sphi 0, %s158
      %s176 = sphi 0, %s176
      %s178 = sphi 0, %s176
      %s179 = sphi 0, %s178
      %s193 = sphi 0, %s179
      %s197 = sphi 0, %s197
      %s199 = sphi 0, %s197
      %s200 = sphi 0, %s199
      %s214 = sphi 0, %s200
      %s218 = sphi 0, %s218
      %s220 = sphi 0, %s218
      %s221 = sphi 0, %s220
      %s235 = sphi 0, %s221
      %s239 = sphi 0, %s239
      %s241 = sphi 0, %s239
      %s242 = sphi 0, %s241
      %s256 = sphi 0, %s242
      %s260 = sphi 0, %s260
      %s262 = sphi 0, %s260
      %s263 = sphi 0, %s262
      %s277 = sphi 0, %s263
      %s281 = sphi 0, %s281
      %s283 = sphi 0, %s281
      %s284 = sphi 0, %s283
      %s298 = sphi 0, %s284
      %s302 = sphi 0, %s302
      %s304 = sphi 0, %s302
      %s305 = sphi 0, %s304
      %s319 = sphi 0, %s305
      %s323 = sphi 0, %s323
      %s325 = sphi 0, %s323
      %s326 = sphi 0, %s325
      %s340 = sphi 0, %s326
      %s344 = sphi 0, %s344
      %s346 = sphi 0, %s344
      %s347 = sphi 0, %s346
      %s361 = sphi 0, %s347
      %s365 = sphi 0, %s365
      %s367 = sphi 0, %s365
      %s368 = sphi 0, %s367
      %s382 = sphi 0, %s368
      %s386 = sphi 0, %s386
      %s388 = sphi 0, %s386
      %s389 = sphi 0, %s388
      %s403 = sphi 0, %s389
      %s409 = sphi 0, %s411
      %s412 = sphi 0, %s409
      %s413 = sphi 0, %s412
      %s429 = sphi 0, %s413
      %s435 = sphi 0, %s437
      %s438 = sphi 0, %s435
      %s439 = sphi 0, %s438
      %s455 = sphi 0, %s439
      %s461 = sphi 0, %s463
      %s464 = sphi 0, %s461
      %s465 = sphi 0, %s464
      %s481 = sphi 0, %s465
    $region4: #{tpu_custom_call.1} parent=1 // loop_header_branch
      %35 = sbr.rel (%p33) target = $region8
    $region5: #{tpu_custom_call.1} parent=1 // loop_body
      %s37 = ssub.s32 %s32, 1
      %s38 = ssub.s32 %s32, 2
      %s39 = sadd.s32 %s32, 1
      %s41 = sadd.s32 %s40, 1
      %p44 = scmp.eq.s32.totalorder %s32, 1
      %p45 = scmp.ne.s32.totalorder %s40, %s42
      %p46 = scmp.eq.s32.totalorder %s32, 0
      %p47 = por %p45, %p46
      %p48 = scmp.ne.s32.totalorder %s40, %s42
      %p49 = scmp.eq.s32.totalorder %s37, 1
      %p50 = por %p48, %p49
      %p51 = scmp.ne.s32.totalorder %s42, %s43
      %p52 = scmp.eq.s32.totalorder %s37, 0
      %p53 = por %p51, %p52
      %p54 = scmp.ne.s32.totalorder %s42, %s43
      %p55 = scmp.eq.s32.totalorder %s38, 1
      %p56 = por %p54, %p55
      %p58 = scmp.ne.s32.totalorder %s43, %s57
      %p59 = scmp.eq.s32.totalorder %s38, 0
      %p60 = por %p58, %p59
      %s61 = ssub.s32 %s32, %s39
      %p62 = scmp.eq.s32.totalorder %s61, 0
      %s64 = sadd.s32 %s63, 1
      %s65 = scalar_select %p62, %s63, %s64
      %p68 = pneg %p62
      %p69 = scmp.eq.s32.totalorder %s32, 1
      %p70 = por %p68, %p69
      %p71 = scmp.ne.s32.totalorder %s63, %s66
      %p72 = scmp.eq.s32.totalorder %s32, 0
      %p73 = por %p71, %p72
      %p74 = scmp.ne.s32.totalorder %s63, %s66
      %p75 = scmp.eq.s32.totalorder %s37, 1
      %p76 = por %p74, %p75
      %p77 = scmp.ne.s32.totalorder %s66, %s67
      %p78 = scmp.eq.s32.totalorder %s37, 0
      %p79 = por %p77, %p78
      %p80 = scmp.ne.s32.totalorder %s66, %s67
      %p81 = scmp.eq.s32.totalorder %s38, 1
      %p82 = por %p80, %p81
      %p84 = scmp.ne.s32.totalorder %s67, %s83
      %p85 = scmp.eq.s32.totalorder %s38, 0
      %p86 = por %p84, %p85
      %s87 = ssub.s32 %s32, %s39
      %p88 = scmp.eq.s32.totalorder %s87, 0
      %s90 = sadd.s32 %s89, 1
      %s91 = scalar_select %p88, %s89, %s90
      %p94 = pneg %p88
      %p95 = scmp.eq.s32.totalorder %s32, 1
      %p96 = por %p94, %p95
      %p97 = scmp.ne.s32.totalorder %s89, %s92
      %p98 = scmp.eq.s32.totalorder %s32, 0
      %p99 = por %p97, %p98
      %p100 = scmp.ne.s32.totalorder %s89, %s92
      %p101 = scmp.eq.s32.totalorder %s37, 1
      %p102 = por %p100, %p101
      %p103 = scmp.ne.s32.totalorder %s92, %s93
      %p104 = scmp.eq.s32.totalorder %s37, 0
      %p105 = por %p103, %p104
      %p106 = scmp.ne.s32.totalorder %s92, %s93
      %p107 = scmp.eq.s32.totalorder %s38, 1
      %p108 = por %p106, %p107
      %p110 = scmp.ne.s32.totalorder %s93, %s109
      %p111 = scmp.eq.s32.totalorder %s38, 0
      %p112 = por %p110, %p111
      %s114 = sadd.s32 %s113, 1
      %p117 = scmp.eq.s32.totalorder %s32, 1
      %p118 = scmp.ne.s32.totalorder %s113, %s115
      %p119 = scmp.eq.s32.totalorder %s32, 0
      %p120 = por %p118, %p119
      %p121 = scmp.ne.s32.totalorder %s113, %s115
      %p122 = scmp.eq.s32.totalorder %s37, 1
      %p123 = por %p121, %p122
      %p124 = scmp.ne.s32.totalorder %s115, %s116
      %p125 = scmp.eq.s32.totalorder %s37, 0
      %p126 = por %p124, %p125
      %p127 = scmp.ne.s32.totalorder %s115, %s116
      %p128 = scmp.eq.s32.totalorder %s38, 1
      %p129 = por %p127, %p128
      %p131 = scmp.ne.s32.totalorder %s116, %s130
      %p132 = scmp.eq.s32.totalorder %s38, 0
      %p133 = por %p131, %p132
      %s135 = sadd.s32 %s134, 1
      %p138 = scmp.eq.s32.totalorder %s32, 1
      %p139 = scmp.ne.s32.totalorder %s134, %s136
      %p140 = scmp.eq.s32.totalorder %s32, 0
      %p141 = por %p139, %p140
      %p142 = scmp.ne.s32.totalorder %s134, %s136
      %p143 = scmp.eq.s32.totalorder %s37, 1
      %p144 = por %p142, %p143
      %p145 = scmp.ne.s32.totalorder %s136, %s137
      %p146 = scmp.eq.s32.totalorder %s37, 0
      %p147 = por %p145, %p146
      %p148 = scmp.ne.s32.totalorder %s136, %s137
      %p149 = scmp.eq.s32.totalorder %s38, 1
      %p150 = por %p148, %p149
      %p152 = scmp.ne.s32.totalorder %s137, %s151
      %p153 = scmp.eq.s32.totalorder %s38, 0
      %p154 = por %p152, %p153
      %s156 = sadd.s32 %s155, 1
      %p159 = scmp.eq.s32.totalorder %s32, 1
      %p160 = scmp.ne.s32.totalorder %s155, %s157
      %p161 = scmp.eq.s32.totalorder %s32, 0
      %p162 = por %p160, %p161
      %p163 = scmp.ne.s32.totalorder %s155, %s157
      %p164 = scmp.eq.s32.totalorder %s37, 1
      %p165 = por %p163, %p164
      %p166 = scmp.ne.s32.totalorder %s157, %s158
      %p167 = scmp.eq.s32.totalorder %s37, 0
      %p168 = por %p166, %p167
      %p169 = scmp.ne.s32.totalorder %s157, %s158
      %p170 = scmp.eq.s32.totalorder %s38, 1
      %p171 = por %p169, %p170
      %p173 = scmp.ne.s32.totalorder %s158, %s172
      %p174 = scmp.eq.s32.totalorder %s38, 0
      %p175 = por %p173, %p174
      %s177 = sadd.s32 %s176, 1
      %p180 = scmp.eq.s32.totalorder %s32, 1
      %p181 = scmp.ne.s32.totalorder %s176, %s178
      %p182 = scmp.eq.s32.totalorder %s32, 0
      %p183 = por %p181, %p182
      %p184 = scmp.ne.s32.totalorder %s176, %s178
      %p185 = scmp.eq.s32.totalorder %s37, 1
      %p186 = por %p184, %p185
      %p187 = scmp.ne.s32.totalorder %s178, %s179
      %p188 = scmp.eq.s32.totalorder %s37, 0
      %p189 = por %p187, %p188
      %p190 = scmp.ne.s32.totalorder %s178, %s179
      %p191 = scmp.eq.s32.totalorder %s38, 1
      %p192 = por %p190, %p191
      %p194 = scmp.ne.s32.totalorder %s179, %s193
      %p195 = scmp.eq.s32.totalorder %s38, 0
      %p196 = por %p194, %p195
      %s198 = sadd.s32 %s197, 1
      %p201 = scmp.eq.s32.totalorder %s32, 1
      %p202 = scmp.ne.s32.totalorder %s197, %s199
      %p203 = scmp.eq.s32.totalorder %s32, 0
      %p204 = por %p202, %p203
      %p205 = scmp.ne.s32.totalorder %s197, %s199
      %p206 = scmp.eq.s32.totalorder %s37, 1
      %p207 = por %p205, %p206
      %p208 = scmp.ne.s32.totalorder %s199, %s200
      %p209 = scmp.eq.s32.totalorder %s37, 0
      %p210 = por %p208, %p209
      %p211 = scmp.ne.s32.totalorder %s199, %s200
      %p212 = scmp.eq.s32.totalorder %s38, 1
      %p213 = por %p211, %p212
      %p215 = scmp.ne.s32.totalorder %s200, %s214
      %p216 = scmp.eq.s32.totalorder %s38, 0
      %p217 = por %p215, %p216
      %s219 = sadd.s32 %s218, 1
      %p222 = scmp.eq.s32.totalorder %s32, 1
      %p223 = scmp.ne.s32.totalorder %s218, %s220
      %p224 = scmp.eq.s32.totalorder %s32, 0
      %p225 = por %p223, %p224
      %p226 = scmp.ne.s32.totalorder %s218, %s220
      %p227 = scmp.eq.s32.totalorder %s37, 1
      %p228 = por %p226, %p227
      %p229 = scmp.ne.s32.totalorder %s220, %s221
      %p230 = scmp.eq.s32.totalorder %s37, 0
      %p231 = por %p229, %p230
      %p232 = scmp.ne.s32.totalorder %s220, %s221
      %p233 = scmp.eq.s32.totalorder %s38, 1
      %p234 = por %p232, %p233
      %p236 = scmp.ne.s32.totalorder %s221, %s235
      %p237 = scmp.eq.s32.totalorder %s38, 0
      %p238 = por %p236, %p237
      %s240 = sadd.s32 %s239, 1
      %p243 = scmp.eq.s32.totalorder %s32, 1
      %p244 = scmp.ne.s32.totalorder %s239, %s241
      %p245 = scmp.eq.s32.totalorder %s32, 0
      %p246 = por %p244, %p245
      %p247 = scmp.ne.s32.totalorder %s239, %s241
      %p248 = scmp.eq.s32.totalorder %s37, 1
      %p249 = por %p247, %p248
      %p250 = scmp.ne.s32.totalorder %s241, %s242
      %p251 = scmp.eq.s32.totalorder %s37, 0
      %p252 = por %p250, %p251
      %p253 = scmp.ne.s32.totalorder %s241, %s242
      %p254 = scmp.eq.s32.totalorder %s38, 1
      %p255 = por %p253, %p254
      %p257 = scmp.ne.s32.totalorder %s242, %s256
      %p258 = scmp.eq.s32.totalorder %s38, 0
      %p259 = por %p257, %p258
      %s261 = sadd.s32 %s260, 1
      %p264 = scmp.eq.s32.totalorder %s32, 1
      %p265 = scmp.ne.s32.totalorder %s260, %s262
      %p266 = scmp.eq.s32.totalorder %s32, 0
      %p267 = por %p265, %p266
      %p268 = scmp.ne.s32.totalorder %s260, %s262
      %p269 = scmp.eq.s32.totalorder %s37, 1
      %p270 = por %p268, %p269
      %p271 = scmp.ne.s32.totalorder %s262, %s263
      %p272 = scmp.eq.s32.totalorder %s37, 0
      %p273 = por %p271, %p272
      %p274 = scmp.ne.s32.totalorder %s262, %s263
      %p275 = scmp.eq.s32.totalorder %s38, 1
      %p276 = por %p274, %p275
      %p278 = scmp.ne.s32.totalorder %s263, %s277
      %p279 = scmp.eq.s32.totalorder %s38, 0
      %p280 = por %p278, %p279
      %s282 = sadd.s32 %s281, 1
      %p285 = scmp.eq.s32.totalorder %s32, 1
      %p286 = scmp.ne.s32.totalorder %s281, %s283
      %p287 = scmp.eq.s32.totalorder %s32, 0
      %p288 = por %p286, %p287
      %p289 = scmp.ne.s32.totalorder %s281, %s283
      %p290 = scmp.eq.s32.totalorder %s37, 1
      %p291 = por %p289, %p290
      %p292 = scmp.ne.s32.totalorder %s283, %s284
      %p293 = scmp.eq.s32.totalorder %s37, 0
      %p294 = por %p292, %p293
      %p295 = scmp.ne.s32.totalorder %s283, %s284
      %p296 = scmp.eq.s32.totalorder %s38, 1
      %p297 = por %p295, %p296
      %p299 = scmp.ne.s32.totalorder %s284, %s298
      %p300 = scmp.eq.s32.totalorder %s38, 0
      %p301 = por %p299, %p300
      %s303 = sadd.s32 %s302, 1
      %p306 = scmp.eq.s32.totalorder %s32, 1
      %p307 = scmp.ne.s32.totalorder %s302, %s304
      %p308 = scmp.eq.s32.totalorder %s32, 0
      %p309 = por %p307, %p308
      %p310 = scmp.ne.s32.totalorder %s302, %s304
      %p311 = scmp.eq.s32.totalorder %s37, 1
      %p312 = por %p310, %p311
      %p313 = scmp.ne.s32.totalorder %s304, %s305
      %p314 = scmp.eq.s32.totalorder %s37, 0
      %p315 = por %p313, %p314
      %p316 = scmp.ne.s32.totalorder %s304, %s305
      %p317 = scmp.eq.s32.totalorder %s38, 1
      %p318 = por %p316, %p317
      %p320 = scmp.ne.s32.totalorder %s305, %s319
      %p321 = scmp.eq.s32.totalorder %s38, 0
      %p322 = por %p320, %p321
      %s324 = sadd.s32 %s323, 1
      %p327 = scmp.eq.s32.totalorder %s32, 1
      %p328 = scmp.ne.s32.totalorder %s323, %s325
      %p329 = scmp.eq.s32.totalorder %s32, 0
      %p330 = por %p328, %p329
      %p331 = scmp.ne.s32.totalorder %s323, %s325
      %p332 = scmp.eq.s32.totalorder %s37, 1
      %p333 = por %p331, %p332
      %p334 = scmp.ne.s32.totalorder %s325, %s326
      %p335 = scmp.eq.s32.totalorder %s37, 0
      %p336 = por %p334, %p335
      %p337 = scmp.ne.s32.totalorder %s325, %s326
      %p338 = scmp.eq.s32.totalorder %s38, 1
      %p339 = por %p337, %p338
      %p341 = scmp.ne.s32.totalorder %s326, %s340
      %p342 = scmp.eq.s32.totalorder %s38, 0
      %p343 = por %p341, %p342
      %s345 = sadd.s32 %s344, 1
      %p348 = scmp.eq.s32.totalorder %s32, 1
      %p349 = scmp.ne.s32.totalorder %s344, %s346
      %p350 = scmp.eq.s32.totalorder %s32, 0
      %p351 = por %p349, %p350
      %p352 = scmp.ne.s32.totalorder %s344, %s346
      %p353 = scmp.eq.s32.totalorder %s37, 1
      %p354 = por %p352, %p353
      %p355 = scmp.ne.s32.totalorder %s346, %s347
      %p356 = scmp.eq.s32.totalorder %s37, 0
      %p357 = por %p355, %p356
      %p358 = scmp.ne.s32.totalorder %s346, %s347
      %p359 = scmp.eq.s32.totalorder %s38, 1
      %p360 = por %p358, %p359
      %p362 = scmp.ne.s32.totalorder %s347, %s361
      %p363 = scmp.eq.s32.totalorder %s38, 0
      %p364 = por %p362, %p363
      %s366 = sadd.s32 %s365, 1
      %p369 = scmp.eq.s32.totalorder %s32, 1
      %p370 = scmp.ne.s32.totalorder %s365, %s367
      %p371 = scmp.eq.s32.totalorder %s32, 0
      %p372 = por %p370, %p371
      %p373 = scmp.ne.s32.totalorder %s365, %s367
      %p374 = scmp.eq.s32.totalorder %s37, 1
      %p375 = por %p373, %p374
      %p376 = scmp.ne.s32.totalorder %s367, %s368
      %p377 = scmp.eq.s32.totalorder %s37, 0
      %p378 = por %p376, %p377
      %p379 = scmp.ne.s32.totalorder %s367, %s368
      %p380 = scmp.eq.s32.totalorder %s38, 1
      %p381 = por %p379, %p380
      %p383 = scmp.ne.s32.totalorder %s368, %s382
      %p384 = scmp.eq.s32.totalorder %s38, 0
      %p385 = por %p383, %p384
      %s387 = sadd.s32 %s386, 1
      %p390 = scmp.eq.s32.totalorder %s32, 1
      %p391 = scmp.ne.s32.totalorder %s386, %s388
      %p392 = scmp.eq.s32.totalorder %s32, 0
      %p393 = por %p391, %p392
      %p394 = scmp.ne.s32.totalorder %s386, %s388
      %p395 = scmp.eq.s32.totalorder %s37, 1
      %p396 = por %p394, %p395
      %p397 = scmp.ne.s32.totalorder %s388, %s389
      %p398 = scmp.eq.s32.totalorder %s37, 0
      %p399 = por %p397, %p398
      %p400 = scmp.ne.s32.totalorder %s388, %s389
      %p401 = scmp.eq.s32.totalorder %s38, 1
      %p402 = por %p400, %p401
      %p404 = scmp.ne.s32.totalorder %s389, %s403
      %p405 = scmp.eq.s32.totalorder %s38, 0
      %p406 = por %p404, %p405
      %s407 = ssub.s32 %s32, %s39
      %p408 = scmp.eq.s32.totalorder %s407, 0
      %s410 = sadd.s32 %s409, 1
      %s411 = scalar_select %p408, %s409, %s410
      %p414 = pneg %p408
      %p415 = scmp.eq.s32.totalorder %s32, 1
      %p416 = por %p414, %p415
      %p417 = scmp.ne.s32.totalorder %s409, %s412
      %p418 = scmp.eq.s32.totalorder %s32, 0
      %p419 = por %p417, %p418
      %p420 = scmp.ne.s32.totalorder %s409, %s412
      %p421 = scmp.eq.s32.totalorder %s37, 1
      %p422 = por %p420, %p421
      %p423 = scmp.ne.s32.totalorder %s412, %s413
      %p424 = scmp.eq.s32.totalorder %s37, 0
      %p425 = por %p423, %p424
      %p426 = scmp.ne.s32.totalorder %s412, %s413
      %p427 = scmp.eq.s32.totalorder %s38, 1
      %p428 = por %p426, %p427
      %p430 = scmp.ne.s32.totalorder %s413, %s429
      %p431 = scmp.eq.s32.totalorder %s38, 0
      %p432 = por %p430, %p431
      %s433 = ssub.s32 %s32, %s39
      %p434 = scmp.eq.s32.totalorder %s433, 0
      %s436 = sadd.s32 %s435, 1
      %s437 = scalar_select %p434, %s435, %s436
      %p440 = pneg %p434
      %p441 = scmp.eq.s32.totalorder %s32, 1
      %p442 = por %p440, %p441
      %p443 = scmp.ne.s32.totalorder %s435, %s438
      %p444 = scmp.eq.s32.totalorder %s32, 0
      %p445 = por %p443, %p444
      %p446 = scmp.ne.s32.totalorder %s435, %s438
      %p447 = scmp.eq.s32.totalorder %s37, 1
      %p448 = por %p446, %p447
      %p449 = scmp.ne.s32.totalorder %s438, %s439
      %p450 = scmp.eq.s32.totalorder %s37, 0
      %p451 = por %p449, %p450
      %p452 = scmp.ne.s32.totalorder %s438, %s439
      %p453 = scmp.eq.s32.totalorder %s38, 1
      %p454 = por %p452, %p453
      %p456 = scmp.ne.s32.totalorder %s439, %s455
      %p457 = scmp.eq.s32.totalorder %s38, 0
      %p458 = por %p456, %p457
      %s459 = ssub.s32 %s32, %s39
      %p460 = scmp.eq.s32.totalorder %s459, 0
      %s462 = sadd.s32 %s461, 1
      %s463 = scalar_select %p460, %s461, %s462
      %p466 = pneg %p460
      %p467 = scmp.eq.s32.totalorder %s32, 1
      %p468 = por %p466, %p467
      %p469 = scmp.ne.s32.totalorder %s461, %s464
      %p470 = scmp.eq.s32.totalorder %s32, 0
      %p471 = por %p469, %p470
      %p472 = scmp.ne.s32.totalorder %s461, %s464
      %p473 = scmp.eq.s32.totalorder %s37, 1
      %p474 = por %p472, %p473
      %p475 = scmp.ne.s32.totalorder %s464, %s465
      %p476 = scmp.eq.s32.totalorder %s37, 0
      %p477 = por %p475, %p476
      %p478 = scmp.ne.s32.totalorder %s464, %s465
      %p479 = scmp.eq.s32.totalorder %s38, 1
      %p480 = por %p478, %p479
      %p482 = scmp.ne.s32.totalorder %s465, %s481
      %p483 = scmp.eq.s32.totalorder %s38, 0
      %p484 = por %p482, %p483
      %p485 = scmp.le.s32.totalorder 1, %s32
      %p486 = scmp.lt.s32.totalorder %s32, 3
      %p487 = pnand %p485, %p486
      %p488 = pneg %p487
      // Predicated region
      $region9: #{tpu_custom_call.1} parent=5 // pred_check
        _
      $region10: #{tpu_custom_call.1} parent=5 // pred_check_branch
        %490 = sbr.rel (%p487) target = $region12
      $region11: #{tpu_custom_call.1} parent=5 // pred_region
        %s491 = ssub.s32 %s32, 1
        // Predicated region
        $region13: #{tpu_custom_call.1} parent=11 // pred_check
          %p492 = pneg %p53
        $region14: #{tpu_custom_call.1} parent=11 // pred_check_branch
          %494 = sbr.rel (%p492) target = $region16
        $region15: #{tpu_custom_call.1} parent=11 // pred_region
          _
        $region16: #{tpu_custom_call.1} parent=11 // pred_fallthru
          _
        // Predicated region
        $region17: #{tpu_custom_call.1} parent=11 // pred_check
          %p495 = pneg %p126
        $region18: #{tpu_custom_call.1} parent=11 // pred_check_branch
          %497 = sbr.rel (%p495) target = $region20
        $region19: #{tpu_custom_call.1} parent=11 // pred_region
          _
        $region20: #{tpu_custom_call.1} parent=11 // pred_fallthru
          _
        // Predicated region
        $region21: #{tpu_custom_call.1} parent=11 // pred_check
          %p498 = pneg %p147
        $region22: #{tpu_custom_call.1} parent=11 // pred_check_branch
          %500 = sbr.rel (%p498) target = $region24
        $region23: #{tpu_custom_call.1} parent=11 // pred_region
          _
        $region24: #{tpu_custom_call.1} parent=11 // pred_fallthru
          _
        // Predicated region
        $region25: #{tpu_custom_call.1} parent=11 // pred_check
          %p501 = pneg %p168
        $region26: #{tpu_custom_call.1} parent=11 // pred_check_branch
          %503 = sbr.rel (%p501) target = $region28
        $region27: #{tpu_custom_call.1} parent=11 // pred_region
          _
        $region28: #{tpu_custom_call.1} parent=11 // pred_fallthru
          _
        // Predicated region
        $region29: #{tpu_custom_call.1} parent=11 // pred_check
          %p504 = pneg %p189
        $region30: #{tpu_custom_call.1} parent=11 // pred_check_branch
          %506 = sbr.rel (%p504) target = $region32
        $region31: #{tpu_custom_call.1} parent=11 // pred_region
          _
        $region32: #{tpu_custom_call.1} parent=11 // pred_fallthru
          _
        // Predicated region
        $region33: #{tpu_custom_call.1} parent=11 // pred_check
          %p507 = pneg %p210
        $region34: #{tpu_custom_call.1} parent=11 // pred_check_branch
          %509 = sbr.rel (%p507) target = $region36
        $region35: #{tpu_custom_call.1} parent=11 // pred_region
          _
        $region36: #{tpu_custom_call.1} parent=11 // pred_fallthru
          _
        // Predicated region
        $region37: #{tpu_custom_call.1} parent=11 // pred_check
          %p510 = pneg %p231
        $region38: #{tpu_custom_call.1} parent=11 // pred_check_branch
          %512 = sbr.rel (%p510) target = $region40
        $region39: #{tpu_custom_call.1} parent=11 // pred_region
          _
        $region40: #{tpu_custom_call.1} parent=11 // pred_fallthru
          _
        // Predicated region
        $region41: #{tpu_custom_call.1} parent=11 // pred_check
          %p513 = pneg %p252
        $region42: #{tpu_custom_call.1} parent=11 // pred_check_branch
          %515 = sbr.rel (%p513) target = $region44
        $region43: #{tpu_custom_call.1} parent=11 // pred_region
          _
        $region44: #{tpu_custom_call.1} parent=11 // pred_fallthru
          _
        // Predicated region
        $region45: #{tpu_custom_call.1} parent=11 // pred_check
          %p516 = pneg %p273
        $region46: #{tpu_custom_call.1} parent=11 // pred_check_branch
          %518 = sbr.rel (%p516) target = $region48
        $region47: #{tpu_custom_call.1} parent=11 // pred_region
          _
        $region48: #{tpu_custom_call.1} parent=11 // pred_fallthru
          _
        // Predicated region
        $region49: #{tpu_custom_call.1} parent=11 // pred_check
          %p519 = pneg %p294
        $region50: #{tpu_custom_call.1} parent=11 // pred_check_branch
          %521 = sbr.rel (%p519) target = $region52
        $region51: #{tpu_custom_call.1} parent=11 // pred_region
          _
        $region52: #{tpu_custom_call.1} parent=11 // pred_fallthru
          _
        // Predicated region
        $region53: #{tpu_custom_call.1} parent=11 // pred_check
          %p522 = pneg %p315
        $region54: #{tpu_custom_call.1} parent=11 // pred_check_branch
          %524 = sbr.rel (%p522) target = $region56
        $region55: #{tpu_custom_call.1} parent=11 // pred_region
          _
        $region56: #{tpu_custom_call.1} parent=11 // pred_fallthru
          _
        // Predicated region
        $region57: #{tpu_custom_call.1} parent=11 // pred_check
          %p525 = pneg %p336
        $region58: #{tpu_custom_call.1} parent=11 // pred_check_branch
          %527 = sbr.rel (%p525) target = $region60
        $region59: #{tpu_custom_call.1} parent=11 // pred_region
          _
        $region60: #{tpu_custom_call.1} parent=11 // pred_fallthru
          _
        // Predicated region
        $region61: #{tpu_custom_call.1} parent=11 // pred_check
          %p528 = pneg %p357
        $region62: #{tpu_custom_call.1} parent=11 // pred_check_branch
          %530 = sbr.rel (%p528) target = $region64
        $region63: #{tpu_custom_call.1} parent=11 // pred_region
          _
        $region64: #{tpu_custom_call.1} parent=11 // pred_fallthru
          _
        // Predicated region
        $region65: #{tpu_custom_call.1} parent=11 // pred_check
          %p531 = pneg %p378
        $region66: #{tpu_custom_call.1} parent=11 // pred_check_branch
          %533 = sbr.rel (%p531) target = $region68
        $region67: #{tpu_custom_call.1} parent=11 // pred_region
          _
        $region68: #{tpu_custom_call.1} parent=11 // pred_fallthru
          _
        // Predicated region
        $region69: #{tpu_custom_call.1} parent=11 // pred_check
          %p534 = pneg %p399
        $region70: #{tpu_custom_call.1} parent=11 // pred_check_branch
          %536 = sbr.rel (%p534) target = $region72
        $region71: #{tpu_custom_call.1} parent=11 // pred_region
          _
        $region72: #{tpu_custom_call.1} parent=11 // pred_fallthru
          _
      $region12: #{tpu_custom_call.1} parent=5 // pred_fallthru
        _
      %p537 = scmp.lt.s32.totalorder %s32, 2
      // Predicated region
      $region73: #{tpu_custom_call.1} parent=5 // pred_check
        %p538 = pneg %p537
      $region74: #{tpu_custom_call.1} parent=5 // pred_check_branch
        %540 = sbr.rel (%p538) target = $region76
      $region75: #{tpu_custom_call.1} parent=5 // pred_region
        // Predicated region
        $region77: #{tpu_custom_call.1} parent=75 // pred_check
          %p541 = pneg %p73
        $region78: #{tpu_custom_call.1} parent=75 // pred_check_branch
          %543 = sbr.rel (%p541) target = $region80
        $region79: #{tpu_custom_call.1} parent=75 // pred_region
          %p544 = scmp.lt.s32.totalorder %s32, 1
          %s545 = scalar_select %p544, %s32, 1
          %s546 = smul.addr %s545, 2
          %s547 = smul.addr %s546, 4
          %s548 = scalar_lea.vmem %s1, %s547
        $region80: #{tpu_custom_call.1} parent=75 // pred_fallthru
          _
        // Predicated region
        $region81: #{tpu_custom_call.1} parent=75 // pred_check
          %p549 = pneg %p99
        $region82: #{tpu_custom_call.1} parent=75 // pred_check_branch
          %551 = sbr.rel (%p549) target = $region84
        $region83: #{tpu_custom_call.1} parent=75 // pred_region
          %p552 = scmp.lt.s32.totalorder %s32, 1
          %s553 = scalar_select %p552, %s32, 1
          %s554 = smul.addr %s553, 4
          %s555 = scalar_lea.vmem %s2, %s554
        $region84: #{tpu_custom_call.1} parent=75 // pred_fallthru
          _
        // Predicated region
        $region85: #{tpu_custom_call.1} parent=75 // pred_check
          %p556 = pneg %p419
        $region86: #{tpu_custom_call.1} parent=75 // pred_check_branch
          %558 = sbr.rel (%p556) target = $region88
        $region87: #{tpu_custom_call.1} parent=75 // pred_region
          %p559 = scmp.lt.s32.totalorder %s32, 1
          %s560 = scalar_select %p559, %s32, 1
          %s561 = scalar_lea.vmem %s17, %s560
        $region88: #{tpu_custom_call.1} parent=75 // pred_fallthru
          _
      $region76: #{tpu_custom_call.1} parent=5 // pred_fallthru
        _
      %p562 = scmp.le.s32.totalorder 1, %s32
      %p563 = scmp.lt.s32.totalorder %s32, 3
      %p564 = pnand %p562, %p563
      %p565 = pneg %p564
      // Predicated region
      $region89: #{tpu_custom_call.1} parent=5 // pred_check
        _
      $region90: #{tpu_custom_call.1} parent=5 // pred_check_branch
        %567 = sbr.rel (%p564) target = $region92
      $region91: #{tpu_custom_call.1} parent=5 // pred_region
        %s568 = ssub.s32 %s32, 1
        %p569 = pneg %p53
        %p570 = pneg %p50
        %p571 = scmp.lt.s32.totalorder %s37, 1
        %s572 = scalar_select %p571, %s37, 1
        %s573 = smul.addr %s572, 2
        %s574 = smul.addr %s573, 4
        %s575 = scalar_lea.vmem %s1, %s574
        %p576 = pneg %p79
        %p577 = pneg %p76
        %p578 = scmp.lt.s32.totalorder %s37, 1
        %s579 = scalar_select %p578, %s37, 1
        %s580 = smul.addr %s579, 4
        %s581 = scalar_lea.vmem %s2, %s580
        %p582 = pneg %p105
        %p583 = pneg %p102
        %p584 = pneg %p126
        %p585 = pneg %p123
        %p586 = pneg %p147
        %p587 = pneg %p144
        %p588 = pneg %p168
        %p589 = pneg %p165
        %p590 = pneg %p189
        %p591 = pneg %p186
        %p592 = pneg %p210
        %p593 = pneg %p207
        %p594 = pneg %p231
        %p595 = pneg %p228
        %p596 = pneg %p252
        %p597 = pneg %p249
        %p598 = pneg %p273
        %p599 = pneg %p270
        %p600 = pneg %p294
        %p601 = pneg %p291
        %p602 = pneg %p315
        %p603 = pneg %p312
        %p604 = pneg %p336
        %p605 = pneg %p333
        %p606 = pneg %p357
        %p607 = pneg %p354
        %p608 = pneg %p378
        %p609 = pneg %p375
        %p610 = pneg %p399
        %p611 = pneg %p396
        %p612 = scmp.lt.s32.totalorder %s37, 1
        %s613 = scalar_select %p612, %s37, 1
        %s614 = scalar_lea.vmem %s17, %s613
        %p615 = pneg %p425
        %p616 = pneg %p422
        %p617 = pneg %p451
        %p618 = pneg %p448
        %s619 = sand.u32 %s438, 1
        %s620 = scalar_lea.sflag [#allocation5], %s619
        %s621 = sand.u32 %s438, 1
        %s622 = smul.addr %s621, 8
        %s623 = scalar_lea.vmem [#allocation4], %s622
        %p624 = pneg %p477
        %p625 = pneg %p474
        %s626 = sand.u32 %s464, 1
        %s627 = scalar_lea.sflag [#allocation7], %s626
        %s628 = sand.u32 %s464, 1
        %s629 = smul.addr %s628, 8
        %s630 = scalar_lea.vmem [#allocation6], %s629
        %p631 = scmp.lt.s32.totalorder %s37, 1
        %s632 = scalar_select %p631, %s37, 1
        %s633 = smul.addr %s632, 2
        %s634 = smul.addr %s633, 4
        %s635 = scalar_lea.vmem %s1, %s634
        %p636 = scmp.lt.s32.totalorder %s37, 1
        %s637 = scalar_select %p636, %s37, 1
        %s638 = smul.addr %s637, 4
        %s639 = scalar_lea.vmem %s2, %s638
        %p640 = scmp.lt.s32.totalorder %s37, 1
        %s641 = scalar_select %p640, %s37, 1
        %s642 = scalar_lea.vmem %s17, %s641
        %v644 = vld [vmem:[%s642] sm:$0x1]
        %v645 = vld [vmem:[%s0] sm:$0xf]
        %v646 = vld [vmem:[%s635] sm:$0xf]
        %v647 = vld [vmem:[%s635 + $0x4] sm:$0xf]
        %v648 = vld [vmem:[%s3] sm:$0xf]
        %v649 = vld [vmem:[%s3 + $0x4] sm:$0xf]
        %v650 = vld [vmem:[%s3 + $0x8] sm:$0xf]
        %v651 = vld [vmem:[%s3 + $0xc] sm:$0xf]
        %v652 = vld [vmem:[%s4] sm:$0xf]
        %v653 = vld [vmem:[%s4 + $0x4] sm:$0xf]
        %v654 = vld [vmem:[%s4 + $0x8] sm:$0xf]
        %v655 = vld [vmem:[%s4 + $0xc] sm:$0xf]
        %v656 = vld [vmem:[%s5] sm:$0xf]
        %v657 = vld [vmem:[%s5 + $0x4] sm:$0xf]
        %v658 = vld [vmem:[%s5 + $0x8] sm:$0xf]
        %v659 = vld [vmem:[%s5 + $0xc] sm:$0xf]
        %v660 = vld [vmem:[%s11] sm:$0xff]
        %v661 = vld [vmem:[%s11 + $0x8] sm:$0xff]
        %v662 = vld [vmem:[%s12] sm:$0xff]
        %v663 = vld [vmem:[%s12 + $0x8] sm:$0xff]
        %v664 = vld [vmem:[%s13] sm:$0xff]
        %v665 = vld [vmem:[%s13 + $0x8] sm:$0xff]
        %v670 = vunpack.c.l.b16 %v648
        %v671 = vunpack.c.l.b16 %v649
        %v672 = vunpack.c.l.b16 %v650
        %v673 = vunpack.c.l.b16 %v651
        %v674 = vpack.c.b16 %v671, %v670
        %v675 = vpack.c.b16 %v673, %v672
        %vm678 = vcmask 261120
        %v680 = vsel %vm678, %v645, 0
        %682 = vmatprep.subr.bf16.mxu0 0
        %683 = vmatpush1.bf16.msra.mxu0 %v674
        %684 = vmatprep.subr.bf16.mxu0 0
        %685 = vmatpush1.bf16.msra.mxu0 %v675
        %686 = vmatprep.subr.bf16.mxu0 0
        %687 = vmatpush1.bf16.msra.mxu0 0
        %688 = vmatprep.subr.bf16.mxu0 0
        %689 = vmatpush1.bf16.msra.mxu0 0
        %690 = vmatprep.subr.bf16.mxu0 0
        %691 = vmatpush1.bf16.msra.mxu0 0
        %692 = vmatprep.subr.bf16.mxu0 0
        %693 = vmatpush1.bf16.msra.mxu0 0
        %694 = vmatprep.subr.bf16.mxu0 0
        %695 = vmatpush1.bf16.msra.mxu0 0
        %696 = vmatprep.subr.bf16.mxu0 0
        %697 = vmatpush1.bf16.msra.mxu0 0
        %698 = vmatprep.subr.bf16.mxu0 0
        %699 = vmatpush1.bf16.msra.mxu0 0
        %700 = vmatprep.subr.bf16.mxu0 0
        %701 = vmatpush1.bf16.msra.mxu0 0
        %702 = vmatprep.subr.bf16.mxu0 0
        %703 = vmatpush1.bf16.msra.mxu0 0
        %704 = vmatprep.subr.bf16.mxu0 0
        %705 = vmatpush1.bf16.msra.mxu0 0
        %706 = vmatprep.subr.bf16.mxu0 0
        %707 = vmatpush1.bf16.msra.mxu0 0
        %708 = vmatprep.subr.bf16.mxu0 0
        %709 = vmatpush1.bf16.msra.mxu0 0
        %710 = vmatprep.subr.bf16.mxu0 0
        %711 = vmatpush1.bf16.msra.mxu0 0
        %712 = vmatprep.subr.bf16.mxu0 0
        %713 = vmatpush1.bf16.msra.mxu0 0
        %714 = vmatprep.mubr.bf16.mxu0 0
        %715 = vmatmul.mubr.bf16.gmra.mrb[0].mxu0 %v680
        %v716 = vpop.f32.mrb[0].mxu0
        %v717 = vadd.f32 0.0, %v716
        %v718 = vpop.f32.mrb[0].mxu0
        %v719 = vpop.f32.mrb[0].mxu0
        %v720 = vpop.f32.mrb[0].mxu0
        %721 = vdwg.mxu0
        %v724 = vunpack.c.l.b16 %v646
        %v725 = vunpack.c.l.b16 %v647
        %v726 = vpack.c.b16 %v725, %v724
        %v731 = vunpack.c.l.b16 %v652
        %v732 = vunpack.c.l.b16 %v653
        %v733 = vunpack.c.l.b16 %v654
        %v734 = vunpack.c.l.b16 %v655
        %v735 = vpack.c.b16 %v732, %v731
        %v736 = vpack.c.b16 %v734, %v733
        %v740 = vsel %vm678, %v726, 0
        %742 = vmatprep.subr.bf16.mxu0 0
        %743 = vmatpush1.bf16.msra.mxu0 %v735
        %744 = vmatprep.subr.bf16.mxu0 0
        %745 = vmatpush1.bf16.msra.mxu0 %v736
        %746 = vmatprep.subr.bf16.mxu0 0
        %747 = vmatpush1.bf16.msra.mxu0 0
        %748 = vmatprep.subr.bf16.mxu0 0
        %749 = vmatpush1.bf16.msra.mxu0 0
        %750 = vmatprep.subr.bf16.mxu0 0
        %751 = vmatpush1.bf16.msra.mxu0 0
        %752 = vmatprep.subr.bf16.mxu0 0
        %753 = vmatpush1.bf16.msra.mxu0 0
        %754 = vmatprep.subr.bf16.mxu0 0
        %755 = vmatpush1.bf16.msra.mxu0 0
        %756 = vmatprep.subr.bf16.mxu0 0
        %757 = vmatpush1.bf16.msra.mxu0 0
        %758 = vmatprep.subr.bf16.mxu0 0
        %759 = vmatpush1.bf16.msra.mxu0 0
        %760 = vmatprep.subr.bf16.mxu0 0
        %761 = vmatpush1.bf16.msra.mxu0 0
        %762 = vmatprep.subr.bf16.mxu0 0
        %763 = vmatpush1.bf16.msra.mxu0 0
        %764 = vmatprep.subr.bf16.mxu0 0
        %765 = vmatpush1.bf16.msra.mxu0 0
        %766 = vmatprep.subr.bf16.mxu0 0
        %767 = vmatpush1.bf16.msra.mxu0 0
        %768 = vmatprep.subr.bf16.mxu0 0
        %769 = vmatpush1.bf16.msra.mxu0 0
        %770 = vmatprep.subr.bf16.mxu0 0
        %771 = vmatpush1.bf16.msra.mxu0 0
        %772 = vmatprep.subr.bf16.mxu0 0
        %773 = vmatpush1.bf16.msra.mxu0 0
        %774 = vmatprep.mubr.bf16.mxu0 0
        %775 = vmatmul.mubr.bf16.gmra.mrb[0].mxu0 %v740
        %v776 = vpop.f32.mrb[0].mxu0
        %v777 = vadd.f32 0.0, %v776
        %v778 = vpop.f32.mrb[0].mxu0
        %v779 = vpop.f32.mrb[0].mxu0
        %v780 = vadd.f32 0.0, %v779
        %v781 = vpop.f32.mrb[0].mxu0
        %782 = vdwg.mxu0
        %v787 = vunpack.c.l.b16 %v656
        %v788 = vunpack.c.l.b16 %v657
        %v789 = vunpack.c.l.b16 %v658
        %v790 = vunpack.c.l.b16 %v659
        %v791 = vpack.c.b16 %v788, %v787
        %v792 = vpack.c.b16 %v790, %v789
        %795 = vmatprep.subr.bf16.mxu0 0
        %796 = vmatpush1.bf16.msra.mxu0 %v791
        %797 = vmatprep.subr.bf16.mxu0 0
        %798 = vmatpush1.bf16.msra.mxu0 %v792
        %799 = vmatprep.subr.bf16.mxu0 0
        %800 = vmatpush1.bf16.msra.mxu0 0
        %801 = vmatprep.subr.bf16.mxu0 0
        %802 = vmatpush1.bf16.msra.mxu0 0
        %803 = vmatprep.subr.bf16.mxu0 0
        %804 = vmatpush1.bf16.msra.mxu0 0
        %805 = vmatprep.subr.bf16.mxu0 0
        %806 = vmatpush1.bf16.msra.mxu0 0
        %807 = vmatprep.subr.bf16.mxu0 0
        %808 = vmatpush1.bf16.msra.mxu0 0
        %809 = vmatprep.subr.bf16.mxu0 0
        %810 = vmatpush1.bf16.msra.mxu0 0
        %811 = vmatprep.subr.bf16.mxu0 0
        %812 = vmatpush1.bf16.msra.mxu0 0
        %813 = vmatprep.subr.bf16.mxu0 0
        %814 = vmatpush1.bf16.msra.mxu0 0
        %815 = vmatprep.subr.bf16.mxu0 0
        %816 = vmatpush1.bf16.msra.mxu0 0
        %817 = vmatprep.subr.bf16.mxu0 0
        %818 = vmatpush1.bf16.msra.mxu0 0
        %819 = vmatprep.subr.bf16.mxu0 0
        %820 = vmatpush1.bf16.msra.mxu0 0
        %821 = vmatprep.subr.bf16.mxu0 0
        %822 = vmatpush1.bf16.msra.mxu0 0
        %823 = vmatprep.subr.bf16.mxu0 0
        %824 = vmatpush1.bf16.msra.mxu0 0
        %825 = vmatprep.subr.bf16.mxu0 0
        %826 = vmatpush1.bf16.msra.mxu0 0
        %827 = vmatprep.mubr.bf16.mxu0 0
        %828 = vmatmul.mubr.bf16.gmra.mrb[0].mxu0 %v740
        %v829 = vpop.f32.mrb[0].mxu0
        %v830 = vadd.f32 0.0, %v829
        %v831 = vpop.f32.mrb[0].mxu0
        %v832 = vpop.f32.mrb[0].mxu0
        %v833 = vadd.f32 0.0, %v832
        %v834 = vpop.f32.mrb[0].mxu0
        %835 = vdwg.mxu0
        %838 = vrot.lane.b32.xlu0 %v660, 8
        %v839 = vpop.permute.xlu0 %838
        %840 = vrot.lane.b32.xlu0 %v661, 8
        %v841 = vpop.permute.xlu0 %840
        %vm844 = vcmask 64512
        %v845 = vsel %vm844, %v660, %v839
        %v846 = vsel %vm844, %v661, %v841
        %849 = vrot.lane.b32.xlu0 %v662, 8
        %v850 = vpop.permute.xlu0 %849
        %851 = vrot.lane.b32.xlu0 %v663, 8
        %v852 = vpop.permute.xlu0 %851
        %v855 = vsel %vm844, %v662, %v850
        %v856 = vsel %vm844, %v663, %v852
        %859 = vrot.lane.b32.xlu0 %v664, 8
        %v860 = vpop.permute.xlu0 %859
        %861 = vrot.lane.b32.xlu0 %v665, 8
        %v862 = vpop.permute.xlu0 %861
        %v865 = vsel %vm844, %v664, %v860
        %v866 = vsel %vm844, %v665, %v862
        %869 = vrot.lane.b32.xlu0 %v777, 124
        %v870 = vpop.permute.xlu0 %869
        %871 = vrot.lane.b32.xlu0 %v780, 124
        %v872 = vpop.permute.xlu0 %871
        %875 = vrot.lane.b32.xlu0 %v777, 12
        %v876 = vpop.permute.xlu0 %875
        %877 = vrot.lane.b32.xlu0 %v780, 12
        %v878 = vpop.permute.xlu0 %877
        %vm881 = vcmask 97280
        %v882 = vsel %vm881, %v870, %v876
        %v883 = vsel %vm881, %v872, %v878
        %884 = vrot.lane.b32.xlu0 %v777, 116
        %v885 = vpop.permute.xlu0 %884
        %886 = vrot.lane.b32.xlu0 %v780, 116
        %v887 = vpop.permute.xlu0 %886
        %890 = vrot.lane.b32.xlu0 %v777, 4
        %v891 = vpop.permute.xlu0 %890
        %892 = vrot.lane.b32.xlu0 %v780, 4
        %v893 = vpop.permute.xlu0 %892
        %vm896 = vcmask 31744
        %v897 = vsel %vm896, %v885, %v891
        %v898 = vsel %vm896, %v887, %v893
        %v899 = vmul.f32 %v777, %v845
        %v900 = vmul.f32 %v780, %v846
        %v901 = vmul.f32 %v882, %v855
        %v902 = vmul.f32 %v883, %v856
        %v903 = vadd.f32 %v899, %v901
        %v904 = vadd.f32 %v900, %v902
        %v905 = vmul.f32 %v897, %v865
        %v906 = vmul.f32 %v898, %v866
        %v907 = vadd.f32 %v903, %v905
        %v908 = vadd.f32 %v904, %v906
        %v909 = vpack.c.bf16 %v717, %v717
        %v910 = vpack.c.bf16 %v908, %v907
        %v911 = vpack.c.bf16 %v833, %v830
        %v913 = vrot.slane %v909, 4
        %914 = vrot.lane.b32.xlu0 %v913, 120
        %v915 = vpop.permute.xlu0 %914
        %vm916 = vcmask 1043456
        %v919 = vsel %vm916, %v909, %v915
        %v921 = vlaneseq
        %v922 = vshrl.u32 %v921, 7
        %v923 = vsub.s32 0, %v922
        %v924 = vrot.slane %v644, %v923
        %v926 = vsel %vm844, %v919, 0
        %v929 = vsel %vm844, %v910, 0
        %931 = vmatprep.subr.bf16.mxu0 0
        %932 = vmatpush1.bf16.xpose.msra.mxu0 %v929
        %933 = vmatprep.subr.bf16.mxu0 0
        %934 = vmatpush1.bf16.xpose.msra.mxu0 0
        %935 = vmatprep.subr.bf16.mxu0 0
        %936 = vmatpush1.bf16.xpose.msra.mxu0 0
        %937 = vmatprep.subr.bf16.mxu0 0
        %938 = vmatpush1.bf16.xpose.msra.mxu0 0
        %939 = vmatprep.subr.bf16.mxu0 0
        %940 = vmatpush1.bf16.xpose.msra.mxu0 0
        %941 = vmatprep.subr.bf16.mxu0 0
        %942 = vmatpush1.bf16.xpose.msra.mxu0 0
        %943 = vmatprep.subr.bf16.mxu0 0
        %944 = vmatpush1.bf16.xpose.msra.mxu0 0
        %945 = vmatprep.subr.bf16.mxu0 0
        %946 = vmatpush1.bf16.xpose.msra.mxu0 0
        %947 = vmatprep.subr.bf16.mxu0 0
        %948 = vmatpush1.bf16.xpose.msra.mxu0 0
        %949 = vmatprep.subr.bf16.mxu0 0
        %950 = vmatpush1.bf16.xpose.msra.mxu0 0
        %951 = vmatprep.subr.bf16.mxu0 0
        %952 = vmatpush1.bf16.xpose.msra.mxu0 0
        %953 = vmatprep.subr.bf16.mxu0 0
        %954 = vmatpush1.bf16.xpose.msra.mxu0 0
        %955 = vmatprep.subr.bf16.mxu0 0
        %956 = vmatpush1.bf16.xpose.msra.mxu0 0
        %957 = vmatprep.subr.bf16.mxu0 0
        %958 = vmatpush1.bf16.xpose.msra.mxu0 0
        %959 = vmatprep.subr.bf16.mxu0 0
        %960 = vmatpush1.bf16.xpose.msra.mxu0 0
        %961 = vmatprep.subr.bf16.mxu0 0
        %962 = vmatpush1.bf16.xpose.msra.mxu0 0
        %963 = vmatprep.mubr.bf16.mxu0 0
        %964 = vmatmul.mubr.bf16.gmra.mrb[0].mxu0 %v926
        %v965 = vpop.f32.mrb[0].mxu0
        %v966 = vadd.f32 %v924, %v965
        %v967 = vpop.f32.mrb[0].mxu0
        %v968 = vpop.f32.mrb[0].mxu0
        %v969 = vadd.f32 %v924, %v968
        %v970 = vpop.f32.mrb[0].mxu0
        %971 = vdwg.mxu0
        %vm972 = vcmask 130048
        %v973 = vsel %vm972, %v966, -inf
        %974 = vmax.xlane.f32.xlu0 %v973
        %v975 = vpop.xlane.xlu0 %974
        %v976 = vsel %vm972, %v969, -inf
        %977 = vmax.xlane.f32.xlu0 %v976
        %v978 = vpop.xlane.xlu0 %977
        %v979 = vsub.f32 %v966, %v975
        %v980 = vsub.f32 %v969, %v978
        %v981 = vmul.f32 %v979, 1.442695
        %v982 = vpow.pop %v981
        %v983 = vmul.f32 %v980, 1.442695
        %v984 = vpow.pop %v983
        %v985 = vsel %vm972, %v982, 0.0
        %986 = vadd.xlane.f32.xlu0 %v985
        %v987 = vpop.xlane.xlu0 %986
        %v988 = vsel %vm972, %v984, 0.0
        %989 = vadd.xlane.f32.xlu0 %v988
        %v990 = vpop.xlane.xlu0 %989
        %v991 = vpack.c.bf16 %v984, %v982
        %v993 = vsel %vm972, %v991, 0
        %995 = vmatprep.subr.bf16.mxu0 0
        %996 = vmatpush1.bf16.msra.mxu0 %v911
        %997 = vmatprep.subr.bf16.mxu0 0
        %998 = vmatpush1.bf16.msra.mxu0 0
        %999 = vmatprep.subr.bf16.mxu0 0
        %1000 = vmatpush1.bf16.msra.mxu0 0
        %1001 = vmatprep.subr.bf16.mxu0 0
        %1002 = vmatpush1.bf16.msra.mxu0 0
        %1003 = vmatprep.subr.bf16.mxu0 0
        %1004 = vmatpush1.bf16.msra.mxu0 0
        %1005 = vmatprep.subr.bf16.mxu0 0
        %1006 = vmatpush1.bf16.msra.mxu0 0
        %1007 = vmatprep.subr.bf16.mxu0 0
        %1008 = vmatpush1.bf16.msra.mxu0 0
        %1009 = vmatprep.subr.bf16.mxu0 0
        %1010 = vmatpush1.bf16.msra.mxu0 0
        %1011 = vmatprep.subr.bf16.mxu0 0
        %1012 = vmatpush1.bf16.msra.mxu0 0
        %1013 = vmatprep.subr.bf16.mxu0 0
        %1014 = vmatpush1.bf16.msra.mxu0 0
        %1015 = vmatprep.subr.bf16.mxu0 0
        %1016 = vmatpush1.bf16.msra.mxu0 0
        %1017 = vmatprep.subr.bf16.mxu0 0
        %1018 = vmatpush1.bf16.msra.mxu0 0
        %1019 = vmatprep.subr.bf16.mxu0 0
        %1020 = vmatpush1.bf16.msra.mxu0 0
        %1021 = vmatprep.subr.bf16.mxu0 0
        %1022 = vmatpush1.bf16.msra.mxu0 0
        %1023 = vmatprep.subr.bf16.mxu0 0
        %1024 = vmatpush1.bf16.msra.mxu0 0
        %1025 = vmatprep.subr.bf16.mxu0 0
        %1026 = vmatpush1.bf16.msra.mxu0 0
        %1027 = vmatprep.mubr.bf16.mxu0 0
        %1028 = vmatmul.mubr.bf16.gmra.mrb[0].mxu0 %v993
        %v1029 = vpop.f32.mrb[0].mxu0
        %v1030 = vadd.f32 0.0, %v1029
        %v1031 = vpop.f32.mrb[0].mxu0
        %v1032 = vpop.f32.mrb[0].mxu0
        %v1033 = vadd.f32 0.0, %v1032
        %v1034 = vpop.f32.mrb[0].mxu0
        %1035 = vdwg.mxu0
        %v1036 = vrcp.pop %v987
        %v1037 = vrcp.pop %v990
        %v1038 = vmul.f32 %v1030, %v1036
        %v1039 = vmul.f32 %v1033, %v1037
        %v1040 = vpack.c.bf16 %v1038, %v1038
        %vm1041 = vcmask 60416
        %1042 = vst.msk [vmem:[#allocation2] sm:$0xf] %vm1041, %v1040
        %v1043 = vpack.c.bf16 %v1039, %v1039
        %v1045 = vunpack.c.l.b16 %v1043
        %v1046 = vpack.c.b16 %v1045, %v1045
        %1047 = vrot.lane.b32.xlu0 %v1046, 8
        %v1048 = vpop.permute.xlu0 %1047
        %vm1050 = vcmask 126016
        %1051 = vst.msk [vmem:[#allocation2] sm:$0xf] %vm1050, %v1048
        %1053 = vrot.lane.b32.xlu0 %v919, 112
        %v1054 = vpop.permute.xlu0 %1053
        %1056 = vrot.lane.b32.xlu0 %v910, 120
        %v1057 = vpop.permute.xlu0 %1056
        %v1059 = vsel %vm844, %v1054, 0
        %v1062 = vsel %vm844, %v1057, 0
        %1064 = vmatprep.subr.bf16.mxu0 0
        %1065 = vmatpush1.bf16.xpose.msra.mxu0 %v1062
        %1066 = vmatprep.subr.bf16.mxu0 0
        %1067 = vmatpush1.bf16.xpose.msra.mxu0 0
        %1068 = vmatprep.subr.bf16.mxu0 0
        %1069 = vmatpush1.bf16.xpose.msra.mxu0 0
        %1070 = vmatprep.subr.bf16.mxu0 0
        %1071 = vmatpush1.bf16.xpose.msra.mxu0 0
        %1072 = vmatprep.subr.bf16.mxu0 0
        %1073 = vmatpush1.bf16.xpose.msra.mxu0 0
        %1074 = vmatprep.subr.bf16.mxu0 0
        %1075 = vmatpush1.bf16.xpose.msra.mxu0 0
        %1076 = vmatprep.subr.bf16.mxu0 0
        %1077 = vmatpush1.bf16.xpose.msra.mxu0 0
        %1078 = vmatprep.subr.bf16.mxu0 0
        %1079 = vmatpush1.bf16.xpose.msra.mxu0 0
        %1080 = vmatprep.subr.bf16.mxu0 0
        %1081 = vmatpush1.bf16.xpose.msra.mxu0 0
        %1082 = vmatprep.subr.bf16.mxu0 0
        %1083 = vmatpush1.bf16.xpose.msra.mxu0 0
        %1084 = vmatprep.subr.bf16.mxu0 0
        %1085 = vmatpush1.bf16.xpose.msra.mxu0 0
        %1086 = vmatprep.subr.bf16.mxu0 0
        %1087 = vmatpush1.bf16.xpose.msra.mxu0 0
        %1088 = vmatprep.subr.bf16.mxu0 0
        %1089 = vmatpush1.bf16.xpose.msra.mxu0 0
        %1090 = vmatprep.subr.bf16.mxu0 0
        %1091 = vmatpush1.bf16.xpose.msra.mxu0 0
        %1092 = vmatprep.subr.bf16.mxu0 0
        %1093 = vmatpush1.bf16.xpose.msra.mxu0 0
        %1094 = vmatprep.subr.bf16.mxu0 0
        %1095 = vmatpush1.bf16.xpose.msra.mxu0 0
        %1096 = vmatprep.mubr.bf16.mxu0 0
        %1097 = vmatmul.mubr.bf16.gmra.mrb[0].mxu0 %v1059
        %v1098 = vpop.f32.mrb[0].mxu0
        %v1099 = vadd.f32 %v924, %v1098
        %v1100 = vpop.f32.mrb[0].mxu0
        %v1101 = vpop.f32.mrb[0].mxu0
        %v1102 = vadd.f32 %v924, %v1101
        %v1103 = vpop.f32.mrb[0].mxu0
        %1104 = vdwg.mxu0
        %v1105 = vsel %vm972, %v1099, -inf
        %1106 = vmax.xlane.f32.xlu0 %v1105
        %v1107 = vpop.xlane.xlu0 %1106
        %v1108 = vsel %vm972, %v1102, -inf
        %1109 = vmax.xlane.f32.xlu0 %v1108
        %v1110 = vpop.xlane.xlu0 %1109
        %v1111 = vsub.f32 %v1099, %v1107
        %v1112 = vsub.f32 %v1102, %v1110
        %v1113 = vmul.f32 %v1111, 1.442695
        %v1114 = vpow.pop %v1113
        %v1115 = vmul.f32 %v1112, 1.442695
        %v1116 = vpow.pop %v1115
        %v1117 = vsel %vm972, %v1114, 0.0
        %1118 = vadd.xlane.f32.xlu0 %v1117
        %v1119 = vpop.xlane.xlu0 %1118
        %v1120 = vsel %vm972, %v1116, 0.0
        %1121 = vadd.xlane.f32.xlu0 %v1120
        %v1122 = vpop.xlane.xlu0 %1121
        %v1123 = vpack.c.bf16 %v1116, %v1114
        %1125 = vrot.lane.b32.xlu0 %v911, 120
        %v1126 = vpop.permute.xlu0 %1125
        %v1129 = vsel %vm972, %v1123, 0
        %1131 = vmatprep.subr.bf16.mxu0 0
        %1132 = vmatpush1.bf16.msra.mxu0 %v1126
        %1133 = vmatprep.subr.bf16.mxu0 0
        %1134 = vmatpush1.bf16.msra.mxu0 0
        %1135 = vmatprep.subr.bf16.mxu0 0
        %1136 = vmatpush1.bf16.msra.mxu0 0
        %1137 = vmatprep.subr.bf16.mxu0 0
        %1138 = vmatpush1.bf16.msra.mxu0 0
        %1139 = vmatprep.subr.bf16.mxu0 0
        %1140 = vmatpush1.bf16.msra.mxu0 0
        %1141 = vmatprep.subr.bf16.mxu0 0
        %1142 = vmatpush1.bf16.msra.mxu0 0
        %1143 = vmatprep.subr.bf16.mxu0 0
        %1144 = vmatpush1.bf16.msra.mxu0 0
        %1145 = vmatprep.subr.bf16.mxu0 0
        %1146 = vmatpush1.bf16.msra.mxu0 0
        %1147 = vmatprep.subr.bf16.mxu0 0
        %1148 = vmatpush1.bf16.msra.mxu0 0
        %1149 = vmatprep.subr.bf16.mxu0 0
        %1150 = vmatpush1.bf16.msra.mxu0 0
        %1151 = vmatprep.subr.bf16.mxu0 0
        %1152 = vmatpush1.bf16.msra.mxu0 0
        %1153 = vmatprep.subr.bf16.mxu0 0
        %1154 = vmatpush1.bf16.msra.mxu0 0
        %1155 = vmatprep.subr.bf16.mxu0 0
        %1156 = vmatpush1.bf16.msra.mxu0 0
        %1157 = vmatprep.subr.bf16.mxu0 0
        %1158 = vmatpush1.bf16.msra.mxu0 0
        %1159 = vmatprep.subr.bf16.mxu0 0
        %1160 = vmatpush1.bf16.msra.mxu0 0
        %1161 = vmatprep.subr.bf16.mxu0 0
        %1162 = vmatpush1.bf16.msra.mxu0 0
        %1163 = vmatprep.mubr.bf16.mxu0 0
        %1164 = vmatmul.mubr.bf16.gmra.mrb[0].mxu0 %v1129
        %v1165 = vpop.f32.mrb[0].mxu0
        %v1166 = vadd.f32 0.0, %v1165
        %v1167 = vpop.f32.mrb[0].mxu0
        %v1168 = vpop.f32.mrb[0].mxu0
        %v1169 = vadd.f32 0.0, %v1168
        %v1170 = vpop.f32.mrb[0].mxu0
        %1171 = vdwg.mxu0
        %v1172 = vrcp.pop %v1119
        %v1173 = vrcp.pop %v1122
        %v1174 = vmul.f32 %v1166, %v1172
        %v1175 = vmul.f32 %v1169, %v1173
        %v1176 = vpack.c.bf16 %v1174, %v1174
        %v1178 = vunpack.c.l.b16 %v1176
        %v1179 = vpack.c.b16 %v1178, %v1178
        %1180 = vrot.lane.b32.xlu0 %v1179, 16
        %v1181 = vpop.permute.xlu0 %1180
        %vm1183 = vcmask 191616
        %1184 = vst.msk [vmem:[#allocation2] sm:$0xf] %vm1183, %v1181
        %v1185 = vpack.c.bf16 %v1175, %v1175
        %v1187 = vunpack.c.l.b16 %v1185
        %v1188 = vpack.c.b16 %v1187, %v1187
        %1189 = vrot.lane.b32.xlu0 %v1188, 24
        %v1190 = vpop.permute.xlu0 %1189
        %vm1192 = vcmask 257216
        %1193 = vst.msk [vmem:[#allocation2] sm:$0xf] %vm1192, %v1190
        %v1194 = vld [vmem:[#allocation2] sm:$0xf]
        %v1195 = vld [vmem:[%s6] sm:$0xf]
        %v1196 = vld [vmem:[%s6 + $0x4] sm:$0xf]
        %v1197 = vld [vmem:[%s6 + $0x8] sm:$0xf]
        %v1198 = vld [vmem:[%s6 + $0xc] sm:$0xf]
        %v1203 = vunpack.c.l.b16 %v1195
        %v1204 = vunpack.c.l.b16 %v1196
        %v1205 = vunpack.c.l.b16 %v1197
        %v1206 = vunpack.c.l.b16 %v1198
        %v1207 = vpack.c.b16 %v1204, %v1203
        %v1208 = vpack.c.b16 %v1206, %v1205
        %v1212 = vsel %vm678, %v1194, 0
        %1214 = vmatprep.subr.bf16.mxu0 0
        %1215 = vmatpush1.bf16.msra.mxu0 %v1207
        %1216 = vmatprep.subr.bf16.mxu0 0
        %1217 = vmatpush1.bf16.msra.mxu0 %v1208
        %1218 = vmatprep.subr.bf16.mxu0 0
        %1219 = vmatpush1.bf16.msra.mxu0 0
        %1220 = vmatprep.subr.bf16.mxu0 0
        %1221 = vmatpush1.bf16.msra.mxu0 0
        %1222 = vmatprep.subr.bf16.mxu0 0
        %1223 = vmatpush1.bf16.msra.mxu0 0
        %1224 = vmatprep.subr.bf16.mxu0 0
        %1225 = vmatpush1.bf16.msra.mxu0 0
        %1226 = vmatprep.subr.bf16.mxu0 0
        %1227 = vmatpush1.bf16.msra.mxu0 0
        %1228 = vmatprep.subr.bf16.mxu0 0
        %1229 = vmatpush1.bf16.msra.mxu0 0
        %1230 = vmatprep.subr.bf16.mxu0 0
        %1231 = vmatpush1.bf16.msra.mxu0 0
        %1232 = vmatprep.subr.bf16.mxu0 0
        %1233 = vmatpush1.bf16.msra.mxu0 0
        %1234 = vmatprep.subr.bf16.mxu0 0
        %1235 = vmatpush1.bf16.msra.mxu0 0
        %1236 = vmatprep.subr.bf16.mxu0 0
        %1237 = vmatpush1.bf16.msra.mxu0 0
        %1238 = vmatprep.subr.bf16.mxu0 0
        %1239 = vmatpush1.bf16.msra.mxu0 0
        %1240 = vmatprep.subr.bf16.mxu0 0
        %1241 = vmatpush1.bf16.msra.mxu0 0
        %1242 = vmatprep.subr.bf16.mxu0 0
        %1243 = vmatpush1.bf16.msra.mxu0 0
        %1244 = vmatprep.subr.bf16.mxu0 0
        %1245 = vmatpush1.bf16.msra.mxu0 0
        %1246 = vmatprep.mubr.bf16.mxu0 0
        %1247 = vmatmul.mubr.bf16.gmra.mrb[0].mxu0 %v1212
        %v1248 = vpop.f32.mrb[0].mxu0
        %v1249 = vadd.f32 0.0, %v1248
        %v1250 = vpop.f32.mrb[0].mxu0
        %v1251 = vpop.f32.mrb[0].mxu0
        %v1252 = vpop.f32.mrb[0].mxu0
        %1253 = vdwg.mxu0
        %1254 = vst.msk [vmem:[%s630] sm:$0xff] %vm678, %v1249
        %v1255 = vpack.c.bf16 %v1249, %v1249
        %v1256 = vld [vmem:[%s639] sm:$0xf]
        %v1257 = vld [vmem:[%s7] sm:$0xf]
        %v1258 = vld [vmem:[%s7 + $0x4] sm:$0xf]
        %v1259 = vld [vmem:[%s7 + $0x8] sm:$0xf]
        %v1260 = vld [vmem:[%s7 + $0xc] sm:$0xf]
        %v1261 = vld [vmem:[%s8] sm:$0xf]
        %v1262 = vld [vmem:[%s8 + $0x4] sm:$0xf]
        %v1263 = vld [vmem:[%s8 + $0x8] sm:$0xf]
        %v1264 = vld [vmem:[%s8 + $0xc] sm:$0xf]
        %v1265 = vld [vmem:[%s9] sm:$0xf]
        %v1266 = vld [vmem:[%s9 + $0x4] sm:$0xf]
        %v1267 = vld [vmem:[%s9 + $0x8] sm:$0xf]
        %v1268 = vld [vmem:[%s9 + $0xc] sm:$0xf]
        %v1269 = vld [vmem:[%s14] sm:$0xff]
        %v1270 = vld [vmem:[%s15] sm:$0xff]
        %v1271 = vld [vmem:[%s16] sm:$0xff]
        %v1276 = vunpack.c.l.b16 %v1257
        %v1277 = vunpack.c.l.b16 %v1258
        %v1278 = vunpack.c.l.b16 %v1259
        %v1279 = vunpack.c.l.b16 %v1260
        %v1280 = vpack.c.b16 %v1277, %v1276
        %v1281 = vpack.c.b16 %v1279, %v1278
        %v1285 = vsel %vm678, %v1256, 0
        %1287 = vmatprep.subr.bf16.mxu0 0
        %1288 = vmatpush1.bf16.msra.mxu0 %v1280
        %1289 = vmatprep.subr.bf16.mxu0 0
        %1290 = vmatpush1.bf16.msra.mxu0 %v1281
        %1291 = vmatprep.subr.bf16.mxu0 0
        %1292 = vmatpush1.bf16.msra.mxu0 0
        %1293 = vmatprep.subr.bf16.mxu0 0
        %1294 = vmatpush1.bf16.msra.mxu0 0
        %1295 = vmatprep.subr.bf16.mxu0 0
        %1296 = vmatpush1.bf16.msra.mxu0 0
        %1297 = vmatprep.subr.bf16.mxu0 0
        %1298 = vmatpush1.bf16.msra.mxu0 0
        %1299 = vmatprep.subr.bf16.mxu0 0
        %1300 = vmatpush1.bf16.msra.mxu0 0
        %1301 = vmatprep.subr.bf16.mxu0 0
        %1302 = vmatpush1.bf16.msra.mxu0 0
        %1303 = vmatprep.subr.bf16.mxu0 0
        %1304 = vmatpush1.bf16.msra.mxu0 0
        %1305 = vmatprep.subr.bf16.mxu0 0
        %1306 = vmatpush1.bf16.msra.mxu0 0
        %1307 = vmatprep.subr.bf16.mxu0 0
        %1308 = vmatpush1.bf16.msra.mxu0 0
        %1309 = vmatprep.subr.bf16.mxu0 0
        %1310 = vmatpush1.bf16.msra.mxu0 0
        %1311 = vmatprep.subr.bf16.mxu0 0
        %1312 = vmatpush1.bf16.msra.mxu0 0
        %1313 = vmatprep.subr.bf16.mxu0 0
        %1314 = vmatpush1.bf16.msra.mxu0 0
        %1315 = vmatprep.subr.bf16.mxu0 0
        %1316 = vmatpush1.bf16.msra.mxu0 0
        %1317 = vmatprep.subr.bf16.mxu0 0
        %1318 = vmatpush1.bf16.msra.mxu0 0
        %1319 = vmatprep.mubr.bf16.mxu0 0
        %1320 = vmatmul.mubr.bf16.gmra.mrb[0].mxu0 %v1285
        %v1321 = vpop.f32.mrb[0].mxu0
        %v1322 = vadd.f32 0.0, %v1321
        %v1323 = vpop.f32.mrb[0].mxu0
        %v1324 = vpop.f32.mrb[0].mxu0
        %v1325 = vpop.f32.mrb[0].mxu0
        %1326 = vdwg.mxu0
        %v1331 = vunpack.c.l.b16 %v1261
        %v1332 = vunpack.c.l.b16 %v1262
        %v1333 = vunpack.c.l.b16 %v1263
        %v1334 = vunpack.c.l.b16 %v1264
        %v1335 = vpack.c.b16 %v1332, %v1331
        %v1336 = vpack.c.b16 %v1334, %v1333
        %v1340 = vsel %vm678, %v1255, 0
        %1342 = vmatprep.subr.bf16.mxu0 0
        %1343 = vmatpush1.bf16.msra.mxu0 %v1335
        %1344 = vmatprep.subr.bf16.mxu0 0
        %1345 = vmatpush1.bf16.msra.mxu0 %v1336
        %1346 = vmatprep.subr.bf16.mxu0 0
        %1347 = vmatpush1.bf16.msra.mxu0 0
        %1348 = vmatprep.subr.bf16.mxu0 0
        %1349 = vmatpush1.bf16.msra.mxu0 0
        %1350 = vmatprep.subr.bf16.mxu0 0
        %1351 = vmatpush1.bf16.msra.mxu0 0
        %1352 = vmatprep.subr.bf16.mxu0 0
        %1353 = vmatpush1.bf16.msra.mxu0 0
        %1354 = vmatprep.subr.bf16.mxu0 0
        %1355 = vmatpush1.bf16.msra.mxu0 0
        %1356 = vmatprep.subr.bf16.mxu0 0
        %1357 = vmatpush1.bf16.msra.mxu0 0
        %1358 = vmatprep.subr.bf16.mxu0 0
        %1359 = vmatpush1.bf16.msra.mxu0 0
        %1360 = vmatprep.subr.bf16.mxu0 0
        %1361 = vmatpush1.bf16.msra.mxu0 0
        %1362 = vmatprep.subr.bf16.mxu0 0
        %1363 = vmatpush1.bf16.msra.mxu0 0
        %1364 = vmatprep.subr.bf16.mxu0 0
        %1365 = vmatpush1.bf16.msra.mxu0 0
        %1366 = vmatprep.subr.bf16.mxu0 0
        %1367 = vmatpush1.bf16.msra.mxu0 0
        %1368 = vmatprep.subr.bf16.mxu0 0
        %1369 = vmatpush1.bf16.msra.mxu0 0
        %1370 = vmatprep.subr.bf16.mxu0 0
        %1371 = vmatpush1.bf16.msra.mxu0 0
        %1372 = vmatprep.subr.bf16.mxu0 0
        %1373 = vmatpush1.bf16.msra.mxu0 0
        %1374 = vmatprep.mubr.bf16.mxu0 0
        %1375 = vmatmul.mubr.bf16.gmra.mrb[0].mxu0 %v1340
        %v1376 = vpop.f32.mrb[0].mxu0
        %v1377 = vadd.f32 0.0, %v1376
        %v1378 = vpop.f32.mrb[0].mxu0
        %v1379 = vpop.f32.mrb[0].mxu0
        %v1380 = vpop.f32.mrb[0].mxu0
        %1381 = vdwg.mxu0
        %v1386 = vunpack.c.l.b16 %v1265
        %v1387 = vunpack.c.l.b16 %v1266
        %v1388 = vunpack.c.l.b16 %v1267
        %v1389 = vunpack.c.l.b16 %v1268
        %v1390 = vpack.c.b16 %v1387, %v1386
        %v1391 = vpack.c.b16 %v1389, %v1388
        %1394 = vmatprep.subr.bf16.mxu0 0
        %1395 = vmatpush1.bf16.msra.mxu0 %v1390
        %1396 = vmatprep.subr.bf16.mxu0 0
        %1397 = vmatpush1.bf16.msra.mxu0 %v1391
        %1398 = vmatprep.subr.bf16.mxu0 0
        %1399 = vmatpush1.bf16.msra.mxu0 0
        %1400 = vmatprep.subr.bf16.mxu0 0
        %1401 = vmatpush1.bf16.msra.mxu0 0
        %1402 = vmatprep.subr.bf16.mxu0 0
        %1403 = vmatpush1.bf16.msra.mxu0 0
        %1404 = vmatprep.subr.bf16.mxu0 0
        %1405 = vmatpush1.bf16.msra.mxu0 0
        %1406 = vmatprep.subr.bf16.mxu0 0
        %1407 = vmatpush1.bf16.msra.mxu0 0
        %1408 = vmatprep.subr.bf16.mxu0 0
        %1409 = vmatpush1.bf16.msra.mxu0 0
        %1410 = vmatprep.subr.bf16.mxu0 0
        %1411 = vmatpush1.bf16.msra.mxu0 0
        %1412 = vmatprep.subr.bf16.mxu0 0
        %1413 = vmatpush1.bf16.msra.mxu0 0
        %1414 = vmatprep.subr.bf16.mxu0 0
        %1415 = vmatpush1.bf16.msra.mxu0 0
        %1416 = vmatprep.subr.bf16.mxu0 0
        %1417 = vmatpush1.bf16.msra.mxu0 0
        %1418 = vmatprep.subr.bf16.mxu0 0
        %1419 = vmatpush1.bf16.msra.mxu0 0
        %1420 = vmatprep.subr.bf16.mxu0 0
        %1421 = vmatpush1.bf16.msra.mxu0 0
        %1422 = vmatprep.subr.bf16.mxu0 0
        %1423 = vmatpush1.bf16.msra.mxu0 0
        %1424 = vmatprep.subr.bf16.mxu0 0
        %1425 = vmatpush1.bf16.msra.mxu0 0
        %1426 = vmatprep.mubr.bf16.mxu0 0
        %1427 = vmatmul.mubr.bf16.gmra.mrb[0].mxu0 %v1340
        %v1428 = vpop.f32.mrb[0].mxu0
        %v1429 = vadd.f32 0.0, %v1428
        %v1430 = vpop.f32.mrb[0].mxu0
        %v1431 = vpop.f32.mrb[0].mxu0
        %v1432 = vpop.f32.mrb[0].mxu0
        %1433 = vdwg.mxu0
        %1435 = vrot.lane.b32.xlu0 %v1269, 8
        %v1436 = vpop.permute.xlu0 %1435
        %1438 = vrot.lane.b32.xlu0 %v1269, 16
        %v1439 = vpop.permute.xlu0 %1438
        %1441 = vrot.lane.b32.xlu0 %v1269, 24
        %v1442 = vpop.permute.xlu0 %1441
        %v1444 = vsel %vm844, %v1269, %v1436
        %v1445 = vsel %vm972, %v1444, %v1439
        %vm1446 = vcmask 195584
        %v1447 = vsel %vm1446, %v1445, %v1442
        %1449 = vrot.lane.b32.xlu0 %v1270, 8
        %v1450 = vpop.permute.xlu0 %1449
        %1452 = vrot.lane.b32.xlu0 %v1270, 16
        %v1453 = vpop.permute.xlu0 %1452
        %1455 = vrot.lane.b32.xlu0 %v1270, 24
        %v1456 = vpop.permute.xlu0 %1455
        %v1458 = vsel %vm844, %v1270, %v1450
        %v1459 = vsel %vm972, %v1458, %v1453
        %v1460 = vsel %vm1446, %v1459, %v1456
        %1462 = vrot.lane.b32.xlu0 %v1271, 8
        %v1463 = vpop.permute.xlu0 %1462
        %1465 = vrot.lane.b32.xlu0 %v1271, 16
        %v1466 = vpop.permute.xlu0 %1465
        %1468 = vrot.lane.b32.xlu0 %v1271, 24
        %v1469 = vpop.permute.xlu0 %1468
        %v1471 = vsel %vm844, %v1271, %v1463
        %v1472 = vsel %vm972, %v1471, %v1466
        %v1473 = vsel %vm1446, %v1472, %v1469
        %1475 = vrot.lane.b32.xlu0 %v1322, 124
        %v1476 = vpop.permute.xlu0 %1475
        %1478 = vrot.lane.b32.xlu0 %v1322, 28
        %v1479 = vpop.permute.xlu0 %1478
        %vm1481 = vcmask 228352
        %v1482 = vsel %vm1481, %v1476, %v1479
        %1483 = vrot.lane.b32.xlu0 %v1322, 100
        %v1484 = vpop.permute.xlu0 %1483
        %1486 = vrot.lane.b32.xlu0 %v1322, 4
        %v1487 = vpop.permute.xlu0 %1486
        %v1489 = vsel %vm896, %v1484, %v1487
        %v1490 = vmul.f32 %v1322, %v1447
        %v1491 = vmul.f32 %v1482, %v1460
        %v1492 = vadd.f32 %v1490, %v1491
        %v1493 = vmul.f32 %v1489, %v1473
        %v1494 = vadd.f32 %v1492, %v1493
        %v1495 = vpack.c.bf16 %v1494, %v1494
        %v1496 = vpack.c.bf16 %v1377, %v1377
        %v1497 = vpack.c.bf16 %v1429, %v1429
        %v1499 = vrot.slane %v1495, 4
        %1500 = vrot.lane.b32.xlu0 %v1499, 120
        %v1501 = vpop.permute.xlu0 %1500
        %v1504 = vsel %vm916, %v1495, %v1501
        %v1505 = vsel %vm844, %v1504, 0
        %v1508 = vsel %vm844, %v1496, 0
        %1510 = vmatprep.subr.bf16.mxu0 0
        %1511 = vmatpush1.bf16.xpose.msra.mxu0 %v1508
        %1512 = vmatprep.subr.bf16.mxu0 0
        %1513 = vmatpush1.bf16.xpose.msra.mxu0 0
        %1514 = vmatprep.subr.bf16.mxu0 0
        %1515 = vmatpush1.bf16.xpose.msra.mxu0 0
        %1516 = vmatprep.subr.bf16.mxu0 0
        %1517 = vmatpush1.bf16.xpose.msra.mxu0 0
        %1518 = vmatprep.subr.bf16.mxu0 0
        %1519 = vmatpush1.bf16.xpose.msra.mxu0 0
        %1520 = vmatprep.subr.bf16.mxu0 0
        %1521 = vmatpush1.bf16.xpose.msra.mxu0 0
        %1522 = vmatprep.subr.bf16.mxu0 0
        %1523 = vmatpush1.bf16.xpose.msra.mxu0 0
        %1524 = vmatprep.subr.bf16.mxu0 0
        %1525 = vmatpush1.bf16.xpose.msra.mxu0 0
        %1526 = vmatprep.subr.bf16.mxu0 0
        %1527 = vmatpush1.bf16.xpose.msra.mxu0 0
        %1528 = vmatprep.subr.bf16.mxu0 0
        %1529 = vmatpush1.bf16.xpose.msra.mxu0 0
        %1530 = vmatprep.subr.bf16.mxu0 0
        %1531 = vmatpush1.bf16.xpose.msra.mxu0 0
        %1532 = vmatprep.subr.bf16.mxu0 0
        %1533 = vmatpush1.bf16.xpose.msra.mxu0 0
        %1534 = vmatprep.subr.bf16.mxu0 0
        %1535 = vmatpush1.bf16.xpose.msra.mxu0 0
        %1536 = vmatprep.subr.bf16.mxu0 0
        %1537 = vmatpush1.bf16.xpose.msra.mxu0 0
        %1538 = vmatprep.subr.bf16.mxu0 0
        %1539 = vmatpush1.bf16.xpose.msra.mxu0 0
        %1540 = vmatprep.subr.bf16.mxu0 0
        %1541 = vmatpush1.bf16.xpose.msra.mxu0 0
        %1542 = vmatprep.mubr.bf16.mxu0 0
        %1543 = vmatmul.mubr.bf16.gmra.mrb[0].mxu0 %v1505
        %v1544 = vpop.f32.mrb[0].mxu0
        %v1545 = vadd.f32 0.0, %v1544
        %v1546 = vpop.f32.mrb[0].mxu0
        %v1547 = vpop.f32.mrb[0].mxu0
        %v1548 = vadd.f32 0.0, %v1547
        %v1549 = vpop.f32.mrb[0].mxu0
        %1550 = vdwg.mxu0
        %v1551 = vsel %vm844, %v1545, -inf
        %1552 = vmax.xlane.f32.xlu0 %v1551
        %v1553 = vpop.xlane.xlu0 %1552
        %v1554 = vsel %vm844, %v1548, -inf
        %1555 = vmax.xlane.f32.xlu0 %v1554
        %v1556 = vpop.xlane.xlu0 %1555
        %v1557 = vsub.f32 %v1545, %v1553
        %v1558 = vsub.f32 %v1548, %v1556
        %v1559 = vmul.f32 %v1557, 1.442695
        %v1560 = vpow.pop %v1559
        %v1561 = vmul.f32 %v1558, 1.442695
        %v1562 = vpow.pop %v1561
        %v1563 = vsel %vm844, %v1560, 0.0
        %1564 = vadd.xlane.f32.xlu0 %v1563
        %v1565 = vpop.xlane.xlu0 %1564
        %v1566 = vsel %vm844, %v1562, 0.0
        %1567 = vadd.xlane.f32.xlu0 %v1566
        %v1568 = vpop.xlane.xlu0 %1567
        %v1569 = vpack.c.bf16 %v1562, %v1560
        %v1571 = vsel %vm844, %v1569, 0
        %v1574 = vsel %vm916, %v1497, 0
        %1576 = vmatprep.subr.bf16.mxu0 0
        %1577 = vmatpush1.bf16.msra.mxu0 %v1574
        %1578 = vmatprep.subr.bf16.mxu0 0
        %1579 = vmatpush1.bf16.msra.mxu0 0
        %1580 = vmatprep.subr.bf16.mxu0 0
        %1581 = vmatpush1.bf16.msra.mxu0 0
        %1582 = vmatprep.subr.bf16.mxu0 0
        %1583 = vmatpush1.bf16.msra.mxu0 0
        %1584 = vmatprep.subr.bf16.mxu0 0
        %1585 = vmatpush1.bf16.msra.mxu0 0
        %1586 = vmatprep.subr.bf16.mxu0 0
        %1587 = vmatpush1.bf16.msra.mxu0 0
        %1588 = vmatprep.subr.bf16.mxu0 0
        %1589 = vmatpush1.bf16.msra.mxu0 0
        %1590 = vmatprep.subr.bf16.mxu0 0
        %1591 = vmatpush1.bf16.msra.mxu0 0
        %1592 = vmatprep.subr.bf16.mxu0 0
        %1593 = vmatpush1.bf16.msra.mxu0 0
        %1594 = vmatprep.subr.bf16.mxu0 0
        %1595 = vmatpush1.bf16.msra.mxu0 0
        %1596 = vmatprep.subr.bf16.mxu0 0
        %1597 = vmatpush1.bf16.msra.mxu0 0
        %1598 = vmatprep.subr.bf16.mxu0 0
        %1599 = vmatpush1.bf16.msra.mxu0 0
        %1600 = vmatprep.subr.bf16.mxu0 0
        %1601 = vmatpush1.bf16.msra.mxu0 0
        %1602 = vmatprep.subr.bf16.mxu0 0
        %1603 = vmatpush1.bf16.msra.mxu0 0
        %1604 = vmatprep.subr.bf16.mxu0 0
        %1605 = vmatpush1.bf16.msra.mxu0 0
        %1606 = vmatprep.subr.bf16.mxu0 0
        %1607 = vmatpush1.bf16.msra.mxu0 0
        %1608 = vmatprep.mubr.bf16.mxu0 0
        %1609 = vmatmul.mubr.bf16.gmra.mrb[0].mxu0 %v1571
        %v1610 = vpop.f32.mrb[0].mxu0
        %v1611 = vadd.f32 0.0, %v1610
        %v1612 = vpop.f32.mrb[0].mxu0
        %v1613 = vpop.f32.mrb[0].mxu0
        %v1614 = vadd.f32 0.0, %v1613
        %v1615 = vpop.f32.mrb[0].mxu0
        %1616 = vdwg.mxu0
        %v1617 = vrcp.pop %v1565
        %v1618 = vrcp.pop %v1568
        %v1619 = vmul.f32 %v1611, %v1617
        %v1620 = vmul.f32 %v1614, %v1618
        %v1621 = vpack.c.bf16 %v1619, %v1619
        %1622 = vst.msk [vmem:[#allocation3] sm:$0xf] %vm1041, %v1621
        %v1623 = vpack.c.bf16 %v1620, %v1620
        %v1625 = vunpack.c.l.b16 %v1623
        %v1626 = vpack.c.b16 %v1625, %v1625
        %1627 = vrot.lane.b32.xlu0 %v1626, 8
        %v1628 = vpop.permute.xlu0 %1627
        %1630 = vst.msk [vmem:[#allocation3] sm:$0xf] %vm1050, %v1628
        %1632 = vrot.lane.b32.xlu0 %v1504, 112
        %v1633 = vpop.permute.xlu0 %1632
        %1635 = vrot.lane.b32.xlu0 %v1496, 120
        %v1636 = vpop.permute.xlu0 %1635
        %v1638 = vsel %vm844, %v1633, 0
        %v1641 = vsel %vm844, %v1636, 0
        %1643 = vmatprep.subr.bf16.mxu0 0
        %1644 = vmatpush1.bf16.xpose.msra.mxu0 %v1641
        %1645 = vmatprep.subr.bf16.mxu0 0
        %1646 = vmatpush1.bf16.xpose.msra.mxu0 0
        %1647 = vmatprep.subr.bf16.mxu0 0
        %1648 = vmatpush1.bf16.xpose.msra.mxu0 0
        %1649 = vmatprep.subr.bf16.mxu0 0
        %1650 = vmatpush1.bf16.xpose.msra.mxu0 0
        %1651 = vmatprep.subr.bf16.mxu0 0
        %1652 = vmatpush1.bf16.xpose.msra.mxu0 0
        %1653 = vmatprep.subr.bf16.mxu0 0
        %1654 = vmatpush1.bf16.xpose.msra.mxu0 0
        %1655 = vmatprep.subr.bf16.mxu0 0
        %1656 = vmatpush1.bf16.xpose.msra.mxu0 0
        %1657 = vmatprep.subr.bf16.mxu0 0
        %1658 = vmatpush1.bf16.xpose.msra.mxu0 0
        %1659 = vmatprep.subr.bf16.mxu0 0
        %1660 = vmatpush1.bf16.xpose.msra.mxu0 0
        %1661 = vmatprep.subr.bf16.mxu0 0
        %1662 = vmatpush1.bf16.xpose.msra.mxu0 0
        %1663 = vmatprep.subr.bf16.mxu0 0
        %1664 = vmatpush1.bf16.xpose.msra.mxu0 0
        %1665 = vmatprep.subr.bf16.mxu0 0
        %1666 = vmatpush1.bf16.xpose.msra.mxu0 0
        %1667 = vmatprep.subr.bf16.mxu0 0
        %1668 = vmatpush1.bf16.xpose.msra.mxu0 0
        %1669 = vmatprep.subr.bf16.mxu0 0
        %1670 = vmatpush1.bf16.xpose.msra.mxu0 0
        %1671 = vmatprep.subr.bf16.mxu0 0
        %1672 = vmatpush1.bf16.xpose.msra.mxu0 0
        %1673 = vmatprep.subr.bf16.mxu0 0
        %1674 = vmatpush1.bf16.xpose.msra.mxu0 0
        %1675 = vmatprep.mubr.bf16.mxu0 0
        %1676 = vmatmul.mubr.bf16.gmra.mrb[0].mxu0 %v1638
        %v1677 = vpop.f32.mrb[0].mxu0
        %v1678 = vadd.f32 0.0, %v1677
        %v1679 = vpop.f32.mrb[0].mxu0
        %v1680 = vpop.f32.mrb[0].mxu0
        %v1681 = vadd.f32 0.0, %v1680
        %v1682 = vpop.f32.mrb[0].mxu0
        %1683 = vdwg.mxu0
        %v1684 = vsel %vm844, %v1678, -inf
        %1685 = vmax.xlane.f32.xlu0 %v1684
        %v1686 = vpop.xlane.xlu0 %1685
        %v1687 = vsel %vm844, %v1681, -inf
        %1688 = vmax.xlane.f32.xlu0 %v1687
        %v1689 = vpop.xlane.xlu0 %1688
        %v1690 = vsub.f32 %v1678, %v1686
        %v1691 = vsub.f32 %v1681, %v1689
        %v1692 = vmul.f32 %v1690, 1.442695
        %v1693 = vpow.pop %v1692
        %v1694 = vmul.f32 %v1691, 1.442695
        %v1695 = vpow.pop %v1694
        %v1696 = vsel %vm844, %v1693, 0.0
        %1697 = vadd.xlane.f32.xlu0 %v1696
        %v1698 = vpop.xlane.xlu0 %1697
        %v1699 = vsel %vm844, %v1695, 0.0
        %1700 = vadd.xlane.f32.xlu0 %v1699
        %v1701 = vpop.xlane.xlu0 %1700
        %v1702 = vpack.c.bf16 %v1695, %v1693
        %1704 = vrot.lane.b32.xlu0 %v1497, 120
        %v1705 = vpop.permute.xlu0 %1704
        %v1707 = vsel %vm844, %v1702, 0
        %v1710 = vsel %vm916, %v1705, 0
        %1712 = vmatprep.subr.bf16.mxu0 0
        %1713 = vmatpush1.bf16.msra.mxu0 %v1710
        %1714 = vmatprep.subr.bf16.mxu0 0
        %1715 = vmatpush1.bf16.msra.mxu0 0
        %1716 = vmatprep.subr.bf16.mxu0 0
        %1717 = vmatpush1.bf16.msra.mxu0 0
        %1718 = vmatprep.subr.bf16.mxu0 0
        %1719 = vmatpush1.bf16.msra.mxu0 0
        %1720 = vmatprep.subr.bf16.mxu0 0
        %1721 = vmatpush1.bf16.msra.mxu0 0
        %1722 = vmatprep.subr.bf16.mxu0 0
        %1723 = vmatpush1.bf16.msra.mxu0 0
        %1724 = vmatprep.subr.bf16.mxu0 0
        %1725 = vmatpush1.bf16.msra.mxu0 0
        %1726 = vmatprep.subr.bf16.mxu0 0
        %1727 = vmatpush1.bf16.msra.mxu0 0
        %1728 = vmatprep.subr.bf16.mxu0 0
        %1729 = vmatpush1.bf16.msra.mxu0 0
        %1730 = vmatprep.subr.bf16.mxu0 0
        %1731 = vmatpush1.bf16.msra.mxu0 0
        %1732 = vmatprep.subr.bf16.mxu0 0
        %1733 = vmatpush1.bf16.msra.mxu0 0
        %1734 = vmatprep.subr.bf16.mxu0 0
        %1735 = vmatpush1.bf16.msra.mxu0 0
        %1736 = vmatprep.subr.bf16.mxu0 0
        %1737 = vmatpush1.bf16.msra.mxu0 0
        %1738 = vmatprep.subr.bf16.mxu0 0
        %1739 = vmatpush1.bf16.msra.mxu0 0
        %1740 = vmatprep.subr.bf16.mxu0 0
        %1741 = vmatpush1.bf16.msra.mxu0 0
        %1742 = vmatprep.subr.bf16.mxu0 0
        %1743 = vmatpush1.bf16.msra.mxu0 0
        %1744 = vmatprep.mubr.bf16.mxu0 0
        %1745 = vmatmul.mubr.bf16.gmra.mrb[0].mxu0 %v1707
        %v1746 = vpop.f32.mrb[0].mxu0
        %v1747 = vadd.f32 0.0, %v1746
        %v1748 = vpop.f32.mrb[0].mxu0
        %v1749 = vpop.f32.mrb[0].mxu0
        %v1750 = vadd.f32 0.0, %v1749
        %v1751 = vpop.f32.mrb[0].mxu0
        %1752 = vdwg.mxu0
        %v1753 = vrcp.pop %v1698
        %v1754 = vrcp.pop %v1701
        %v1755 = vmul.f32 %v1747, %v1753
        %v1756 = vmul.f32 %v1750, %v1754
        %v1757 = vpack.c.bf16 %v1755, %v1755
        %v1759 = vunpack.c.l.b16 %v1757
        %v1760 = vpack.c.b16 %v1759, %v1759
        %1761 = vrot.lane.b32.xlu0 %v1760, 16
        %v1762 = vpop.permute.xlu0 %1761
        %1764 = vst.msk [vmem:[#allocation3] sm:$0xf] %vm1183, %v1762
        %v1765 = vpack.c.bf16 %v1756, %v1756
        %v1767 = vunpack.c.l.b16 %v1765
        %v1768 = vpack.c.b16 %v1767, %v1767
        %1769 = vrot.lane.b32.xlu0 %v1768, 24
        %v1770 = vpop.permute.xlu0 %1769
        %1772 = vst.msk [vmem:[#allocation3] sm:$0xf] %vm1192, %v1770
        %v1773 = vld [vmem:[#allocation3] sm:$0xf]
        %v1774 = vld [vmem:[%s10] sm:$0xf]
        %v1775 = vld [vmem:[%s10 + $0x4] sm:$0xf]
        %v1776 = vld [vmem:[%s10 + $0x8] sm:$0xf]
        %v1777 = vld [vmem:[%s10 + $0xc] sm:$0xf]
        %v1782 = vunpack.c.l.b16 %v1774
        %v1783 = vunpack.c.l.b16 %v1775
        %v1784 = vunpack.c.l.b16 %v1776
        %v1785 = vunpack.c.l.b16 %v1777
        %v1786 = vpack.c.b16 %v1783, %v1782
        %v1787 = vpack.c.b16 %v1785, %v1784
        %v1791 = vsel %vm678, %v1773, 0
        %1793 = vmatprep.subr.bf16.mxu0 0
        %1794 = vmatpush1.bf16.msra.mxu0 %v1786
        %1795 = vmatprep.subr.bf16.mxu0 0
        %1796 = vmatpush1.bf16.msra.mxu0 %v1787
        %1797 = vmatprep.subr.bf16.mxu0 0
        %1798 = vmatpush1.bf16.msra.mxu0 0
        %1799 = vmatprep.subr.bf16.mxu0 0
        %1800 = vmatpush1.bf16.msra.mxu0 0
        %1801 = vmatprep.subr.bf16.mxu0 0
        %1802 = vmatpush1.bf16.msra.mxu0 0
        %1803 = vmatprep.subr.bf16.mxu0 0
        %1804 = vmatpush1.bf16.msra.mxu0 0
        %1805 = vmatprep.subr.bf16.mxu0 0
        %1806 = vmatpush1.bf16.msra.mxu0 0
        %1807 = vmatprep.subr.bf16.mxu0 0
        %1808 = vmatpush1.bf16.msra.mxu0 0
        %1809 = vmatprep.subr.bf16.mxu0 0
        %1810 = vmatpush1.bf16.msra.mxu0 0
        %1811 = vmatprep.subr.bf16.mxu0 0
        %1812 = vmatpush1.bf16.msra.mxu0 0
        %1813 = vmatprep.subr.bf16.mxu0 0
        %1814 = vmatpush1.bf16.msra.mxu0 0
        %1815 = vmatprep.subr.bf16.mxu0 0
        %1816 = vmatpush1.bf16.msra.mxu0 0
        %1817 = vmatprep.subr.bf16.mxu0 0
        %1818 = vmatpush1.bf16.msra.mxu0 0
        %1819 = vmatprep.subr.bf16.mxu0 0
        %1820 = vmatpush1.bf16.msra.mxu0 0
        %1821 = vmatprep.subr.bf16.mxu0 0
        %1822 = vmatpush1.bf16.msra.mxu0 0
        %1823 = vmatprep.subr.bf16.mxu0 0
        %1824 = vmatpush1.bf16.msra.mxu0 0
        %1825 = vmatprep.mubr.bf16.mxu0 0
        %1826 = vmatmul.mubr.bf16.gmra.mrb[0].mxu0 %v1791
        %v1827 = vpop.f32.mrb[0].mxu0
        %v1828 = vadd.f32 0.0, %v1827
        %v1829 = vpop.f32.mrb[0].mxu0
        %v1830 = vpop.f32.mrb[0].mxu0
        %v1831 = vpop.f32.mrb[0].mxu0
        %1832 = vdwg.mxu0
        %1833 = vst.msk [vmem:[%s623] sm:$0xff] %vm678, %v1828
        %s1834 = sand.u32 %s438, 1
        %s1835 = scalar_lea.sflag [#allocation5], %s1834
        %s1836 = sand.u32 %s438, 1
        %s1837 = smul.addr %s1836, 8
        %s1838 = scalar_lea.vmem [#allocation4], %s1837
        %s1839 = sand.u32 %s464, 1
        %s1840 = scalar_lea.sflag [#allocation7], %s1839
        %s1841 = sand.u32 %s464, 1
        %s1842 = smul.addr %s1841, 8
        %s1843 = scalar_lea.vmem [#allocation6], %s1842
        // Predicated region
        $region93: #{tpu_custom_call.1} parent=91 // pred_check
          %p1844 = pneg %p448
        $region94: #{tpu_custom_call.1} parent=91 // pred_check_branch
          %1846 = sbr.rel (%p1844) target = $region96
        $region95: #{tpu_custom_call.1} parent=91 // pred_region
          %s1848 = ssub.s32 128, 128
          %1849 = vsyncadd %s1835, %s1848
          %s1850 = smul.addr %s37, 128
          %s1851 = scalar_lea.hbm %s18, %s1850
          %s1853 = sshll.u32 %s1838, 4
          %s1854 = int_to_ptr.vmem [resolvable:$true] %s1853
          %1856 = dma.vmem_to_hbm [thread:$0]  %s1854, 128, %s1851, %s1835
        $region96: #{tpu_custom_call.1} parent=91 // pred_fallthru
          _
        // Predicated region
        $region97: #{tpu_custom_call.1} parent=91 // pred_check
          %p1857 = pneg %p474
        $region98: #{tpu_custom_call.1} parent=91 // pred_check_branch
          %1859 = sbr.rel (%p1857) target = $region100
        $region99: #{tpu_custom_call.1} parent=91 // pred_region
          %s1861 = ssub.s32 128, 128
          %1862 = vsyncadd %s1840, %s1861
          %s1863 = smul.addr %s37, 128
          %s1864 = scalar_lea.hbm %s19, %s1863
          %s1866 = sshll.u32 %s1843, 4
          %s1867 = int_to_ptr.vmem [resolvable:$true] %s1866
          %1869 = dma.vmem_to_hbm [thread:$0]  %s1867, 128, %s1864, %s1840
        $region100: #{tpu_custom_call.1} parent=91 // pred_fallthru
          _
      $region92: #{tpu_custom_call.1} parent=5 // pred_fallthru
        _
      %p1870 = scmp.le.s32.totalorder 2, %s32
      // Predicated region
      $region101: #{tpu_custom_call.1} parent=5 // pred_check
        %p1871 = pneg %p1870
      $region102: #{tpu_custom_call.1} parent=5 // pred_check_branch
        %1873 = sbr.rel (%p1871) target = $region104
      $region103: #{tpu_custom_call.1} parent=5 // pred_region
        %s1874 = ssub.s32 %s32, 2
        // Predicated region
        $region105: #{tpu_custom_call.1} parent=103 // pred_check
          %p1875 = pneg %p454
        $region106: #{tpu_custom_call.1} parent=103 // pred_check_branch
          %1877 = sbr.rel (%p1875) target = $region108
        $region107: #{tpu_custom_call.1} parent=103 // pred_region
          %s1878 = sand.u32 %s439, 1
          %s1879 = scalar_lea.sflag [#allocation5], %s1878
          %s1880 = sand.u32 %s439, 1
          %s1881 = smul.addr %s1880, 8
          %s1882 = scalar_lea.vmem [#allocation4], %s1881
          %1883 = dma.done %s1879, 128
        $region108: #{tpu_custom_call.1} parent=103 // pred_fallthru
          _
        // Predicated region
        $region109: #{tpu_custom_call.1} parent=103 // pred_check
          %p1884 = pneg %p480
        $region110: #{tpu_custom_call.1} parent=103 // pred_check_branch
          %1886 = sbr.rel (%p1884) target = $region112
        $region111: #{tpu_custom_call.1} parent=103 // pred_region
          %s1887 = sand.u32 %s465, 1
          %s1888 = scalar_lea.sflag [#allocation7], %s1887
          %s1889 = sand.u32 %s465, 1
          %s1890 = smul.addr %s1889, 8
          %s1891 = scalar_lea.vmem [#allocation6], %s1890
          %1892 = dma.done %s1888, 128
        $region112: #{tpu_custom_call.1} parent=103 // pred_fallthru
          _
      $region104: #{tpu_custom_call.1} parent=5 // pred_fallthru
        _
    $region6: #{tpu_custom_call.1} parent=1 // loop_footer
      %s36 = sadd.s32 1, %s32
    $region7: #{tpu_custom_call.1} parent=1 // loop_footer_branch
      %31 = sbr.rel target = $region3
    $region8: #{tpu_custom_call.1} parent=1 // loop_exit
      _
    %1893 = vsyncpa [#allocation5], 1
    %s1894 = scalar_lea.sflag [#allocation5], 1
    %1895 = vsyncpa %s1894, 1
    %1896 = vsyncpa [#allocation7], 1
    %s1897 = scalar_lea.sflag [#allocation7], 1
    %1898 = vsyncpa %s1897, 1

</llo_original>
